<compile_context>
chip_gen: v7x
topology: tpu7x:2x2x1
jax: 0.10.0
libtpu: 0.0.40
codegen_flags: <defaults>
</compile_context>

<pallas_src>
import math

import jax
import jax.numpy as jnp
from jax.experimental import pallas as pl
from jax.experimental.pallas import tpu as pltpu


_VMEM_LIMIT = 48 * 1024 * 1024     # explicit budget (v7x has 64 MiB physical VMEM)
_MLP_T_CHUNK = 512                 # bounds the (chunk, intermediate_dim) GELU tensor


# ----------------------------------------------------------------------------
# In-kernel helpers
# ----------------------------------------------------------------------------
def _gelu_tanh(x):
    # tanh-approximate GELU (EUP tanh); matches nn.GELU() to ~3e-3 abs.
    c = math.sqrt(2.0 / math.pi)
    return 0.5 * x * (1.0 + jnp.tanh(c * (x + 0.044715 * x * x * x)))


def _layernorm(x, w, b, eps=1e-6):
    # LayerNorm over the last (channel) axis, biased variance, eps=1e-6 (module spec).
    mean = jnp.mean(x, axis=-1, keepdims=True)
    xc = x - mean
    var = jnp.mean(xc * xc, axis=-1, keepdims=True)
    return xc * jax.lax.rsqrt(var + eps) * w + b


def _shifted(x, s, row_iota):
    """x[t + (-s)] with zero outside [0, T): roll along time (sublanes) + edge mask."""
    T = x.shape[0]
    y = x if (s % T) == 0 else pltpu.roll(x, shift=s % T, axis=0)
    if s > 0:
        y = jnp.where(row_iota >= s, y, 0.0)
    elif s < 0:
        y = jnp.where(row_iota < T + s, y, 0.0)
    return y


# ----------------------------------------------------------------------------
# Kernels
# ----------------------------------------------------------------------------
def embed_kernel(x_ref, w_ref, b_ref, o_ref):
    # x_ref: (T, Cin) f32   w_ref: (7*Cin, H) bf16 (im2col-reshaped)   o_ref: (T, H) f32
    T, Cin = x_ref.shape
    x = x_ref[...]
    row = jax.lax.broadcasted_iota(jnp.int32, (T, Cin), 0)
    # im2col: tap k contributes x[t + k - 3]  ->  shift s = 3 - k
    cols = [_shifted(x, 3 - k, row) for k in range(7)]
    xcol = jnp.concatenate(cols, axis=-1).astype(jnp.bfloat16)      # (T, 7*Cin)
    o_ref[...] = (jnp.dot(xcol, w_ref[...], preferred_element_type=jnp.float32)
                  + b_ref[...])


def convnext_stack_kernel(x_ref, dww_ref, dwb_ref, lnw_ref, lnb_ref,
                          w1_ref, b1_ref, w2_ref, b2_ref, g_ref,
                          o_ref, act_ref):
    # Grid = (B, L).  act_ref (T, H) f32 scratch holds the activation across the
    # whole block stack for the current batch element (no HBM round trips).
    l = pl.program_id(1)

    @pl.when(l == 0)
    def _init():
        act_ref[...] = x_ref[...]

    T, H = act_ref.shape
    xres = act_ref[...]                                   # (T, H) f32 residual

    # ---- depthwise Conv1d(k=7, pad=3, groups=H): rolls + edge masks (no padded copy)
    w_dw = dww_ref[...]                                   # (7, H) f32
    row = jax.lax.broadcasted_iota(jnp.int32, (T, H), 0)
    acc = jnp.zeros((T, H), jnp.float32)
    for k in range(7):
        acc = acc + _shifted(xres, 3 - k, row) * w_dw[k:k + 1, :]
    dw = acc + dwb_ref[...]

    # ---- LayerNorm over channels (f32)
    xn = _layernorm(dw, lnw_ref[...], lnb_ref[...])

    # ---- pointwise MLP on the MXU (bf16 operands, f32 accumulation), time-chunked
    w1 = w1_ref[...]                                      # (H, I) bf16
    w2 = w2_ref[...]                                      # (I, H) bf16
    b1 = b1_ref[...]
    b2 = b2_ref[...]
    g = g_ref[...]
    tc = T if T <= _MLP_T_CHUNK else _MLP_T_CHUNK
    for lo in range(0, T, tc):
        hi = min(T, lo + tc)
        h = jnp.dot(xn[lo:hi].astype(jnp.bfloat16), w1,
                    preferred_element_type=jnp.float32) + b1
        h = _gelu_tanh(h)
        y = jnp.dot(h.astype(jnp.bfloat16), w2,
                    preferred_element_type=jnp.float32) + b2
        act_ref[lo:hi, :] = xres[lo:hi] + g * y           # layer-scale + residual

    @pl.when(l == pl.num_programs(1) - 1)
    def _flush():
        o_ref[...] = act_ref[...]


def head_kernel(xp_ref, lnw_ref, lnb_ref, w_ref, b_ref, o_ref):
    # xp_ref: (Tp, H) f32 (already reflection-left-padded; LN is per-position so
    # pad-before-LN == pad-after-LN).  w_ref: (H, OUT) bf16.  o_ref: (Tp, OUT) f32
    # holding [exp(mag).clamp(100) | pi*sin(phase)] lane-dense.
    xn = _layernorm(xp_ref[...], lnw_ref[...], lnb_ref[...])
    out = jnp.dot(xn.astype(jnp.bfloat16), w_ref[...],
                  preferred_element_type=jnp.float32) + b_ref[...]
    Tp, OUT = o_ref.shape
    half = OUT // 2
    lane = jax.lax.broadcasted_iota(jnp.int32, (Tp, OUT), 1)
    mag = jnp.minimum(jnp.exp(out), 100.0)                # exp().clamp(max=100)
    ph = math.pi * jnp.sin(out)
    o_ref[...] = jnp.where(lane < half, mag, ph)


# ----------------------------------------------------------------------------
# Wrapper
# ----------------------------------------------------------------------------
def vocos_decoder_forward(z, params):
    """z: (B, Cin, T) f32 (PyTorch NCT).  Returns (mag, phase), each (B, OUT//2, T+1)."""
    B, Cin, T = z.shape
    H = params["embed_b"].shape[-1]
    OUT = params["out_b"].shape[-1]
    L, _, I = params["w1"].shape

    x = jnp.transpose(z, (0, 2, 1))                       # (B, T, Cin), channels-last

    cp_batch = pltpu.CompilerParams(dimension_semantics=("parallel",),
                                    vmem_limit_bytes=_VMEM_LIMIT)
    cp_fused = pltpu.CompilerParams(dimension_semantics=("parallel", "arbitrary"),
                                    vmem_limit_bytes=_VMEM_LIMIT)

    # ---- embed: Conv1d(Cin -> H, k=7, pad=3) as one im2col MXU dot ----
    x = pl.pallas_call(
        embed_kernel,
        grid=(B,),
        in_specs=[
            pl.BlockSpec((None, T, Cin), lambda b: (b, 0, 0)),
            pl.BlockSpec((7 * Cin, H), lambda b: (0, 0)),
            pl.BlockSpec((1, H), lambda b: (0, 0)),
        ],
        out_specs=pl.BlockSpec((None, T, H), lambda b: (b, 0, 0)),
        out_shape=jax.ShapeDtypeStruct((B, T, H), jnp.float32),
        compiler_params=cp_batch,
    )(x, params["embed_w"], params["embed_b"])

    # ---- fused ConvNeXt stack: one call, weights streamed over the block axis ----
    wspec = lambda shp: pl.BlockSpec((None,) + shp, lambda b, l: (l, 0, 0))
    x = pl.pallas_call(
        convnext_stack_kernel,
        grid=(B, L),
        in_specs=[
            pl.BlockSpec((None, T, H), lambda b, l: (b, 0, 0)),   # activation: 1 DMA / batch
            wspec((7, H)),    # dw_w
            wspec((1, H)),    # dw_b
            wspec((1, H)),    # ln_w
            wspec((1, H)),    # ln_b
            wspec((H, I)),    # w1 (bf16)
            wspec((1, I)),    # b1
            wspec((I, H)),    # w2 (bf16)
            wspec((1, H)),    # b2
            wspec((1, H)),    # gamma
        ],
        out_specs=pl.BlockSpec((None, T, H), lambda b, l: (b, 0, 0)),
        out_shape=jax.ShapeDtypeStruct((B, T, H), jnp.float32),
        scratch_shapes=[pltpu.VMEM((T, H), jnp.float32)],
        compiler_params=cp_fused,
    )(x, params["dw_w"], params["dw_b"], params["ln_w"], params["ln_b"],
      params["w1"], params["b1"], params["w2"], params["b2"], params["gamma"])

    # ---- ReflectionPad1d([1,0]) + final LN + 1x1 conv + mag/phase head ----
    xp = jnp.concatenate([x[:, 1:2, :], x], axis=1)       # (B, T+1, H)
    Tp = T + 1
    outc = pl.pallas_call(
        head_kernel,
        grid=(B,),
        in_specs=[
            pl.BlockSpec((None, Tp, H), lambda b: (b, 0, 0)),
            pl.BlockSpec((1, H), lambda b: (0, 0)),
            pl.BlockSpec((1, H), lambda b: (0, 0)),
            pl.BlockSpec((H, OUT), lambda b: (0, 0)),
            pl.BlockSpec((1, OUT), lambda b: (0, 0)),
        ],
        out_specs=pl.BlockSpec((None, Tp, OUT), lambda b: (b, 0, 0)),
        out_shape=jax.ShapeDtypeStruct((B, Tp, OUT), jnp.float32),
        compiler_params=cp_batch,
    )(xp, params["fln_w"], params["fln_b"], params["out_w"], params["out_b"])

    half = OUT // 2
    mag = jnp.transpose(outc[:, :, :half], (0, 2, 1))
    phase = jnp.transpose(outc[:, :, half:], (0, 2, 1))
    # TODO(synk): self.stft.inverse(mag, phase) (TorchSTFT) not provided; stop here.
    return mag, phase


# ----------------------------------------------------------------------------
# Deterministic synthetic params (kernel-ready layout; PyTorch mapping in comments)
# ----------------------------------------------------------------------------
def init_params(key, in_z_channel, hidden_dim, intermediate_dim, num_layer, out_channel):
    ls = 1.0 / num_layer
    keys = jax.random.split(key, 5)
    Cin, H, I, L = in_z_channel, hidden_dim, intermediate_dim, num_layer

    def tn(k, shape):  # trunc_normal_(std=0.02) proxy (synthetic init)
        return (0.02 * jax.random.normal(k, shape)).astype(jnp.float32)

    return {
        # Conv1d(Cin,H,7) torch weight (H,Cin,7) -> tap-major (7,Cin,H) -> (7*Cin,H), bf16
        "embed_w": tn(keys[0], (7 * Cin, H)).astype(jnp.bfloat16),
        "embed_b": jnp.zeros((1, H), jnp.float32),
        # per-block params stacked along a leading L axis (streamed over block grid axis)
        "dw_w": tn(keys[1], (L, 7, H)),                   # torch (H,1,7) -> (7,H) per block
        "dw_b": jnp.zeros((L, 1, H), jnp.float32),
        "ln_w": jnp.ones((L, 1, H), jnp.float32),
        "ln_b": jnp.zeros((L, 1, H), jnp.float32),
        "w1": tn(keys[2], (L, H, I)).astype(jnp.bfloat16),  # torch Linear (I,H) -> (H,I)
        "b1": jnp.zeros((L, 1, I), jnp.float32),
        "w2": tn(keys[3], (L, I, H)).astype(jnp.bfloat16),  # torch Linear (H,I) -> (I,H)
        "b2": jnp.zeros((L, 1, H), jnp.float32),
        "gamma": jnp.full((L, 1, H), ls, jnp.float32),
        "fln_w": jnp.ones((1, H), jnp.float32),
        "fln_b": jnp.zeros((1, H), jnp.float32),
        "out_w": tn(keys[4], (H, out_channel)).astype(jnp.bfloat16),  # torch (OUT,H,1)
        "out_b": jnp.zeros((1, out_channel), jnp.float32),
    }


# ----------------------------------------------------------------------------
# Pure-JAX reference (f32, exact-erf GELU) for a tolerance check
# ----------------------------------------------------------------------------
def _ref_ln(x, w, b, eps=1e-6):
    m = jnp.mean(x, axis=-1, keepdims=True)
    v = jnp.mean((x - m) ** 2, axis=-1, keepdims=True)
    return (x - m) * jax.lax.rsqrt(v + eps) * w + b


def vocos_decoder_reference(z, params):
    x = jnp.transpose(z, (0, 2, 1)).astype(jnp.float32)   # (B, T, Cin)
    B, T, Cin = x.shape
    H = params["embed_b"].shape[-1]
    w_e = params["embed_w"].astype(jnp.float32).reshape(7, Cin, H)
    xp = jnp.pad(x, ((0, 0), (3, 3), (0, 0)))
    x = sum(jnp.einsum("btc,ch->bth", xp[:, k:k + T], w_e[k]) for k in range(7))
    x = x + params["embed_b"]
    L = params["w1"].shape[0]
    for l in range(L):
        res = x
        xp = jnp.pad(x, ((0, 0), (3, 3), (0, 0)))
        d = sum(xp[:, k:k + T, :] * params["dw_w"][l][k] for k in range(7)) + params["dw_b"][l]
        n = _ref_ln(d, params["ln_w"][l], params["ln_b"][l])
        h = jax.nn.gelu(n @ params["w1"][l].astype(jnp.float32) + params["b1"][l],
                        approximate=False)
        y = h @ params["w2"][l].astype(jnp.float32) + params["b2"][l]
        x = res + params["gamma"][l] * y
    xn = _ref_ln(x, params["fln_w"], params["fln_b"])
    xpd = jnp.concatenate([xn[:, 1:2], xn], axis=1)
    out = xpd @ params["out_w"].astype(jnp.float32) + params["out_b"]
    half = out.shape[-1] // 2
    mag = jnp.minimum(jnp.exp(out[..., :half]), 100.0)
    ph = math.pi * jnp.sin(out[..., half:])
    return jnp.transpose(mag, (0, 2, 1)), jnp.transpose(ph, (0, 2, 1))


if __name__ == "__main__":
    # Small, module-consistent shapes (scaled-down hyperparameters).
    B, T = 2, 16
    IN_Z = 64            # in_z_channel
    HIDDEN = 128         # hidden_dim
    INTER = 256          # intermediate_dim
    NUM_LAYER = 2
    N_FFT = 126          # gen_istft_n_fft -> out_channel = N_FFT + 2 = 128
    OUT = N_FFT + 2

    root = jax.random.PRNGKey(0)
    kp, kz = jax.random.split(root)
    params = init_params(kp, IN_Z, HIDDEN, INTER, NUM_LAYER, OUT)
    z = jax.random.normal(kz, (B, IN_Z, T), jnp.float32)   # PyTorch NCT input

    fwd = jax.jit(vocos_decoder_forward)
    mag, phase = fwd(z, params)
    jax.block_until_ready((mag, phase))

    assert mag.shape == (B, OUT // 2, T + 1) and phase.shape == (B, OUT // 2, T + 1)
    assert bool(jnp.all(jnp.isfinite(mag))) and bool(jnp.all(jnp.isfinite(phase)))

    mag_ref, ph_ref = vocos_decoder_reference(z, params)
    assert float(jnp.max(jnp.abs(mag - mag_ref))) < 2e-2
    assert float(jnp.max(jnp.abs(phase - ph_ref))) < 2e-2
    print("KERNEL_OK")
</pallas_src>

<mosaic_0001>
module attributes {stable_mosaic.version = 11 : i64} {
  func.func @embed_kernel(%arg0: i32, %arg1: memref<1x16x64xf32, #tpu.memory_space<vmem>>, %arg2: memref<448x128xbf16, #tpu.memory_space<vmem>>, %arg3: memref<1x128xf32, #tpu.memory_space<vmem>>, %arg4: memref<1x16x128xf32, #tpu.memory_space<vmem>>) attributes {dimension_semantics = [#tpu.dimension_semantics<parallel>], iteration_bounds = array<i64: 2>, scalar_prefetch = 0 : i64, scratch_operands = 0 : i64, tpu.core_type = #tpu.core_type<tc>, window_params = [{transform_indices = @transform_0, window_bounds = array<i64: 1, 16, 64>}, {pipeline_mode = #tpu.pipeline_mode<synchronous>, transform_indices = @transform_1, window_bounds = array<i64: 448, 128>}, {pipeline_mode = #tpu.pipeline_mode<synchronous>, transform_indices = @transform_2, window_bounds = array<i64: 1, 128>}, {transform_indices = @transform_3, window_bounds = array<i64: 1, 16, 128>}]} {
    %c0 = arith.constant 0 : index
    %c0_0 = arith.constant 0 : index
    %c0_1 = arith.constant 0 : index
    %0 = vector.load %arg1[%c0, %c0_0, %c0_1] : memref<1x16x64xf32, #tpu.memory_space<vmem>>, vector<1x16x64xf32>
    %1 = vector.shape_cast %0 : vector<1x16x64xf32> to vector<16x64xf32>
    %2 = tpu.iota {dimensions = array<i32: 0>} : vector<16x64xi32>
    %c3_i32 = arith.constant 3 : i32
    %3 = tpu.dynamic_rotate %1 by %c3_i32 dim 0 : vector<16x64xf32>, i32 -> vector<16x64xf32>
    %c3_i32_2 = arith.constant 3 : i32
    %4 = vector.broadcast %c3_i32_2 : i32 to vector<16x64xi32>
    %5 = arith.cmpi sge, %2, %4 : vector<16x64xi32>
    %cst = arith.constant 0.000000e+00 : f32
    %6 = vector.broadcast %cst : f32 to vector<16x64xf32>
    %7 = arith.select %5, %3, %6 : vector<16x64xi1>, vector<16x64xf32>
    %c2_i32 = arith.constant 2 : i32
    %8 = tpu.dynamic_rotate %1 by %c2_i32 dim 0 : vector<16x64xf32>, i32 -> vector<16x64xf32>
    %c2_i32_3 = arith.constant 2 : i32
    %9 = vector.broadcast %c2_i32_3 : i32 to vector<16x64xi32>
    %10 = arith.cmpi sge, %2, %9 : vector<16x64xi32>
    %cst_4 = arith.constant 0.000000e+00 : f32
    %11 = vector.broadcast %cst_4 : f32 to vector<16x64xf32>
    %12 = arith.select %10, %8, %11 : vector<16x64xi1>, vector<16x64xf32>
    %c1_i32 = arith.constant 1 : i32
    %13 = tpu.dynamic_rotate %1 by %c1_i32 dim 0 : vector<16x64xf32>, i32 -> vector<16x64xf32>
    %c1_i32_5 = arith.constant 1 : i32
    %14 = vector.broadcast %c1_i32_5 : i32 to vector<16x64xi32>
    %15 = arith.cmpi sge, %2, %14 : vector<16x64xi32>
    %cst_6 = arith.constant 0.000000e+00 : f32
    %16 = vector.broadcast %cst_6 : f32 to vector<16x64xf32>
    %17 = arith.select %15, %13, %16 : vector<16x64xi1>, vector<16x64xf32>
    %c15_i32 = arith.constant 15 : i32
    %18 = tpu.dynamic_rotate %1 by %c15_i32 dim 0 : vector<16x64xf32>, i32 -> vector<16x64xf32>
    %c15_i32_7 = arith.constant 15 : i32
    %19 = vector.broadcast %c15_i32_7 : i32 to vector<16x64xi32>
    %20 = arith.cmpi slt, %2, %19 : vector<16x64xi32>
    %cst_8 = arith.constant 0.000000e+00 : f32
    %21 = vector.broadcast %cst_8 : f32 to vector<16x64xf32>
    %22 = arith.select %20, %18, %21 : vector<16x64xi1>, vector<16x64xf32>
    %c14_i32 = arith.constant 14 : i32
    %23 = tpu.dynamic_rotate %1 by %c14_i32 dim 0 : vector<16x64xf32>, i32 -> vector<16x64xf32>
    %c14_i32_9 = arith.constant 14 : i32
    %24 = vector.broadcast %c14_i32_9 : i32 to vector<16x64xi32>
    %25 = arith.cmpi slt, %2, %24 : vector<16x64xi32>
    %cst_10 = arith.constant 0.000000e+00 : f32
    %26 = vector.broadcast %cst_10 : f32 to vector<16x64xf32>
    %27 = arith.select %25, %23, %26 : vector<16x64xi1>, vector<16x64xf32>
    %c13_i32 = arith.constant 13 : i32
    %28 = tpu.dynamic_rotate %1 by %c13_i32 dim 0 : vector<16x64xf32>, i32 -> vector<16x64xf32>
    %c13_i32_11 = arith.constant 13 : i32
    %29 = vector.broadcast %c13_i32_11 : i32 to vector<16x64xi32>
    %30 = arith.cmpi slt, %2, %29 : vector<16x64xi32>
    %cst_12 = arith.constant 0.000000e+00 : f32
    %31 = vector.broadcast %cst_12 : f32 to vector<16x64xf32>
    %32 = arith.select %30, %28, %31 : vector<16x64xi1>, vector<16x64xf32>
    %33 = tpu.concatenate %7, %12, %17, %1, %22, %27, %32 in 1 : vector<16x64xf32>, vector<16x64xf32>, vector<16x64xf32>, vector<16x64xf32>, vector<16x64xf32>, vector<16x64xf32>, vector<16x64xf32> -> vector<16x448xf32>
    %34 = arith.truncf %33 : vector<16x448xf32> to vector<16x448xbf16>
    %c0_13 = arith.constant 0 : index
    %c0_14 = arith.constant 0 : index
    %35 = vector.load %arg2[%c0_13, %c0_14] : memref<448x128xbf16, #tpu.memory_space<vmem>>, vector<448x128xbf16>
    %cst_15 = arith.constant dense<0.000000e+00> : vector<16x128xf32>
    %36 = tpu.matmul %34, %35, %cst_15 {dimension_numbers = #tpu.dot_dimension_numbers<[1], [0], [0], [1], [0, 0, 1, 1], [], []>} : vector<16x448xbf16>, vector<448x128xbf16>, vector<16x128xf32> -> vector<16x128xf32>
    %c0_16 = arith.constant 0 : index
    %c0_17 = arith.constant 0 : index
    %37 = vector.load %arg3[%c0_16, %c0_17] : memref<1x128xf32, #tpu.memory_space<vmem>>, vector<1x128xf32>
    %38 = vector.broadcast %37 : vector<1x128xf32> to vector<16x128xf32>
    %39 = arith.addf %36, %38 : vector<16x128xf32>
    %c0_18 = arith.constant 0 : index
    %c0_19 = arith.constant 0 : index
    %c0_20 = arith.constant 0 : index
    %40 = vector.load %arg4[%c0_18, %c0_19, %c0_20] : memref<1x16x128xf32, #tpu.memory_space<vmem>>, vector<1x16x128xf32>
    %41 = vector.shape_cast %40 : vector<1x16x128xf32> to vector<16x128xf32>
    %42 = vector.shape_cast %39 : vector<16x128xf32> to vector<1x16x128xf32>
    tpu.vector_store %arg4[%c0_18, %c0_19, %c0_20], %42 {strides = array<i32>} : memref<1x16x128xf32, #tpu.memory_space<vmem>>, vector<1x16x128xf32>,
    return
  }
  func.func @transform_0(%arg0: i32) -> (i32, i32, i32) {
    %c0_i32 = arith.constant 0 : i32
    %c0_i32_0 = arith.constant 0 : i32
    %c0_i32_1 = arith.constant 0 : i32
    return %arg0, %c0_i32, %c0_i32_0 : i32, i32, i32
  }
  func.func @transform_1(%arg0: i32) -> (i32, i32) {
    %c0_i32 = arith.constant 0 : i32
    %c0_i32_0 = arith.constant 0 : i32
    %c0_i32_1 = arith.constant 0 : i32
    return %c0_i32, %c0_i32_0 : i32, i32
  }
  func.func @transform_2(%arg0: i32) -> (i32, i32) {
    %c0_i32 = arith.constant 0 : i32
    %c0_i32_0 = arith.constant 0 : i32
    %c0_i32_1 = arith.constant 0 : i32
    return %c0_i32, %c0_i32_0 : i32, i32
  }
  func.func @transform_3(%arg0: i32) -> (i32, i32, i32) {
    %c0_i32 = arith.constant 0 : i32
    %c0_i32_0 = arith.constant 0 : i32
    %c0_i32_1 = arith.constant 0 : i32
    return %arg0, %c0_i32, %c0_i32_0 : i32, i32, i32
  }
}

module attributes {stable_mosaic.version = 11 : i64} {
  func.func @convnext_stack_kernel(%arg0: i32, %arg1: i32, %arg2: memref<1x16x128xf32, #tpu.memory_space<vmem>>, %arg3: memref<1x7x128xf32, #tpu.memory_space<vmem>>, %arg4: memref<1x1x128xf32, #tpu.memory_space<vmem>>, %arg5: memref<1x1x128xf32, #tpu.memory_space<vmem>>, %arg6: memref<1x1x128xf32, #tpu.memory_space<vmem>>, %arg7: memref<1x128x256xbf16, #tpu.memory_space<vmem>>, %arg8: memref<1x1x256xf32, #tpu.memory_space<vmem>>, %arg9: memref<1x256x128xbf16, #tpu.memory_space<vmem>>, %arg10: memref<1x1x128xf32, #tpu.memory_space<vmem>>, %arg11: memref<1x1x128xf32, #tpu.memory_space<vmem>>, %arg12: memref<1x16x128xf32, #tpu.memory_space<vmem>>, %arg13: memref<16x128xf32, #tpu.memory_space<vmem>>) attributes {dimension_semantics = [#tpu.dimension_semantics<parallel>, #tpu.dimension_semantics<arbitrary>], iteration_bounds = array<i64: 2, 2>, scalar_prefetch = 0 : i64, scratch_operands = 1 : i64, tpu.core_type = #tpu.core_type<tc>, window_params = [{transform_indices = @transform_0, window_bounds = array<i64: 1, 16, 128>}, {transform_indices = @transform_1, window_bounds = array<i64: 1, 7, 128>}, {transform_indices = @transform_2, window_bounds = array<i64: 1, 1, 128>}, {transform_indices = @transform_3, window_bounds = array<i64: 1, 1, 128>}, {transform_indices = @transform_4, window_bounds = array<i64: 1, 1, 128>}, {transform_indices = @transform_5, window_bounds = array<i64: 1, 128, 256>}, {transform_indices = @transform_6, window_bounds = array<i64: 1, 1, 256>}, {transform_indices = @transform_7, window_bounds = array<i64: 1, 256, 128>}, {transform_indices = @transform_8, window_bounds = array<i64: 1, 1, 128>}, {transform_indices = @transform_9, window_bounds = array<i64: 1, 1, 128>}, {transform_indices = @transform_10, window_bounds = array<i64: 1, 16, 128>}]} {
    %c0_i32 = arith.constant 0 : i32
    %0 = arith.cmpi eq, %arg1, %c0_i32 : i32
    %1 = arith.extui %0 : i1 to i32
    %c0_i32_0 = arith.constant 0 : i32
    %2 = arith.cmpi ne, %1, %c0_i32_0 : i32
    scf.if %2 {
      %c0_56 = arith.constant 0 : index
      %c0_57 = arith.constant 0 : index
      %c0_58 = arith.constant 0 : index
      %132 = vector.load %arg2[%c0_56, %c0_57, %c0_58] : memref<1x16x128xf32, #tpu.memory_space<vmem>>, vector<1x16x128xf32>
      %133 = vector.shape_cast %132 : vector<1x16x128xf32> to vector<16x128xf32>
      %c0_59 = arith.constant 0 : index
      %c0_60 = arith.constant 0 : index
      %134 = vector.load %arg13[%c0_59, %c0_60] : memref<16x128xf32, #tpu.memory_space<vmem>>, vector<16x128xf32>
      tpu.vector_store %arg13[%c0_59, %c0_60], %133 {strides = array<i32>} : memref<16x128xf32, #tpu.memory_space<vmem>>, vector<16x128xf32>,
    } else {
    }
    %c0 = arith.constant 0 : index
    %c0_1 = arith.constant 0 : index
    %3 = vector.load %arg13[%c0, %c0_1] : memref<16x128xf32, #tpu.memory_space<vmem>>, vector<16x128xf32>
    %c0_2 = arith.constant 0 : index
    %c0_3 = arith.constant 0 : index
    %c0_4 = arith.constant 0 : index
    %4 = vector.load %arg3[%c0_2, %c0_3, %c0_4] : memref<1x7x128xf32, #tpu.memory_space<vmem>>, vector<1x7x128xf32>
    %5 = vector.shape_cast %4 : vector<1x7x128xf32> to vector<7x128xf32>
    %6 = tpu.iota {dimensions = array<i32: 0>} : vector<16x128xi32>
    %cst = arith.constant 0.000000e+00 : f32
    %7 = vector.broadcast %cst : f32 to vector<16x128xf32>
    %c3_i32 = arith.constant 3 : i32
    %8 = tpu.dynamic_rotate %3 by %c3_i32 dim 0 : vector<16x128xf32>, i32 -> vector<16x128xf32>
    %c3_i32_5 = arith.constant 3 : i32
    %9 = vector.broadcast %c3_i32_5 : i32 to vector<16x128xi32>
    %10 = arith.cmpi sge, %6, %9 : vector<16x128xi32>
    %cst_6 = arith.constant 0.000000e+00 : f32
    %11 = vector.broadcast %cst_6 : f32 to vector<16x128xf32>
    %12 = arith.select %10, %8, %11 : vector<16x128xi1>, vector<16x128xf32>
    %13 = vector.extract_strided_slice %5 {offsets = [0, 0], sizes = [1, 128], strides = [1, 1]} : vector<7x128xf32> to vector<1x128xf32>
    %14 = vector.broadcast %13 : vector<1x128xf32> to vector<16x128xf32>
    %15 = arith.mulf %12, %14 : vector<16x128xf32>
    %16 = arith.addf %7, %15 : vector<16x128xf32>
    %c2_i32 = arith.constant 2 : i32
    %17 = tpu.dynamic_rotate %3 by %c2_i32 dim 0 : vector<16x128xf32>, i32 -> vector<16x128xf32>
    %c2_i32_7 = arith.constant 2 : i32
    %18 = vector.broadcast %c2_i32_7 : i32 to vector<16x128xi32>
    %19 = arith.cmpi sge, %6, %18 : vector<16x128xi32>
    %cst_8 = arith.constant 0.000000e+00 : f32
    %20 = vector.broadcast %cst_8 : f32 to vector<16x128xf32>
    %21 = arith.select %19, %17, %20 : vector<16x128xi1>, vector<16x128xf32>
    %22 = vector.extract_strided_slice %5 {offsets = [1, 0], sizes = [1, 128], strides = [1, 1]} : vector<7x128xf32> to vector<1x128xf32>
    %23 = vector.broadcast %22 : vector<1x128xf32> to vector<16x128xf32>
    %24 = arith.mulf %21, %23 : vector<16x128xf32>
    %25 = arith.addf %16, %24 : vector<16x128xf32>
    %c1_i32 = arith.constant 1 : i32
    %26 = tpu.dynamic_rotate %3 by %c1_i32 dim 0 : vector<16x128xf32>, i32 -> vector<16x128xf32>
    %c1_i32_9 = arith.constant 1 : i32
    %27 = vector.broadcast %c1_i32_9 : i32 to vector<16x128xi32>
    %28 = arith.cmpi sge, %6, %27 : vector<16x128xi32>
    %cst_10 = arith.constant 0.000000e+00 : f32
    %29 = vector.broadcast %cst_10 : f32 to vector<16x128xf32>
    %30 = arith.select %28, %26, %29 : vector<16x128xi1>, vector<16x128xf32>
    %31 = vector.extract_strided_slice %5 {offsets = [2, 0], sizes = [1, 128], strides = [1, 1]} : vector<7x128xf32> to vector<1x128xf32>
    %32 = vector.broadcast %31 : vector<1x128xf32> to vector<16x128xf32>
    %33 = arith.mulf %30, %32 : vector<16x128xf32>
    %34 = arith.addf %25, %33 : vector<16x128xf32>
    %35 = vector.extract_strided_slice %5 {offsets = [3, 0], sizes = [1, 128], strides = [1, 1]} : vector<7x128xf32> to vector<1x128xf32>
    %36 = vector.broadcast %35 : vector<1x128xf32> to vector<16x128xf32>
    %37 = arith.mulf %3, %36 : vector<16x128xf32>
    %38 = arith.addf %34, %37 : vector<16x128xf32>
    %c15_i32 = arith.constant 15 : i32
    %39 = tpu.dynamic_rotate %3 by %c15_i32 dim 0 : vector<16x128xf32>, i32 -> vector<16x128xf32>
    %c15_i32_11 = arith.constant 15 : i32
    %40 = vector.broadcast %c15_i32_11 : i32 to vector<16x128xi32>
    %41 = arith.cmpi slt, %6, %40 : vector<16x128xi32>
    %cst_12 = arith.constant 0.000000e+00 : f32
    %42 = vector.broadcast %cst_12 : f32 to vector<16x128xf32>
    %43 = arith.select %41, %39, %42 : vector<16x128xi1>, vector<16x128xf32>
    %44 = vector.extract_strided_slice %5 {offsets = [4, 0], sizes = [1, 128], strides = [1, 1]} : vector<7x128xf32> to vector<1x128xf32>
    %45 = vector.broadcast %44 : vector<1x128xf32> to vector<16x128xf32>
    %46 = arith.mulf %43, %45 : vector<16x128xf32>
    %47 = arith.addf %38, %46 : vector<16x128xf32>
    %c14_i32 = arith.constant 14 : i32
    %48 = tpu.dynamic_rotate %3 by %c14_i32 dim 0 : vector<16x128xf32>, i32 -> vector<16x128xf32>
    %c14_i32_13 = arith.constant 14 : i32
    %49 = vector.broadcast %c14_i32_13 : i32 to vector<16x128xi32>
    %50 = arith.cmpi slt, %6, %49 : vector<16x128xi32>
    %cst_14 = arith.constant 0.000000e+00 : f32
    %51 = vector.broadcast %cst_14 : f32 to vector<16x128xf32>
    %52 = arith.select %50, %48, %51 : vector<16x128xi1>, vector<16x128xf32>
    %53 = vector.extract_strided_slice %5 {offsets = [5, 0], sizes = [1, 128], strides = [1, 1]} : vector<7x128xf32> to vector<1x128xf32>
    %54 = vector.broadcast %53 : vector<1x128xf32> to vector<16x128xf32>
    %55 = arith.mulf %52, %54 : vector<16x128xf32>
    %56 = arith.addf %47, %55 : vector<16x128xf32>
    %c13_i32 = arith.constant 13 : i32
    %57 = tpu.dynamic_rotate %3 by %c13_i32 dim 0 : vector<16x128xf32>, i32 -> vector<16x128xf32>
    %c13_i32_15 = arith.constant 13 : i32
    %58 = vector.broadcast %c13_i32_15 : i32 to vector<16x128xi32>
    %59 = arith.cmpi slt, %6, %58 : vector<16x128xi32>
    %cst_16 = arith.constant 0.000000e+00 : f32
    %60 = vector.broadcast %cst_16 : f32 to vector<16x128xf32>
    %61 = arith.select %59, %57, %60 : vector<16x128xi1>, vector<16x128xf32>
    %62 = vector.extract_strided_slice %5 {offsets = [6, 0], sizes = [1, 128], strides = [1, 1]} : vector<7x128xf32> to vector<1x128xf32>
    %63 = vector.broadcast %62 : vector<1x128xf32> to vector<16x128xf32>
    %64 = arith.mulf %61, %63 : vector<16x128xf32>
    %65 = arith.addf %56, %64 : vector<16x128xf32>
    %c0_17 = arith.constant 0 : index
    %c0_18 = arith.constant 0 : index
    %c0_19 = arith.constant 0 : index
    %66 = vector.load %arg4[%c0_17, %c0_18, %c0_19] : memref<1x1x128xf32, #tpu.memory_space<vmem>>, vector<1x1x128xf32>
    %67 = vector.shape_cast %66 : vector<1x1x128xf32> to vector<1x128xf32>
    %68 = vector.broadcast %67 : vector<1x128xf32> to vector<16x128xf32>
    %69 = arith.addf %65, %68 : vector<16x128xf32>
    %c0_20 = arith.constant 0 : index
    %c0_21 = arith.constant 0 : index
    %c0_22 = arith.constant 0 : index
    %70 = vector.load %arg5[%c0_20, %c0_21, %c0_22] : memref<1x1x128xf32, #tpu.memory_space<vmem>>, vector<1x1x128xf32>
    %71 = vector.shape_cast %70 : vector<1x1x128xf32> to vector<1x128xf32>
    %c0_23 = arith.constant 0 : index
    %c0_24 = arith.constant 0 : index
    %c0_25 = arith.constant 0 : index
    %72 = vector.load %arg6[%c0_23, %c0_24, %c0_25] : memref<1x1x128xf32, #tpu.memory_space<vmem>>, vector<1x1x128xf32>
    %73 = vector.shape_cast %72 : vector<1x1x128xf32> to vector<1x128xf32>
    %cst_26 = arith.constant dense<0.000000e+00> : vector<16xf32>
    %74 = vector.multi_reduction <add>, %69, %cst_26 [1] : vector<16x128xf32> to vector<16xf32>
    %75 = vector.shape_cast %74 : vector<16xf32> to vector<16x1xf32>
    %cst_27 = arith.constant 1.280000e+02 : f32
    %76 = vector.broadcast %cst_27 : f32 to vector<16x1xf32>
    %77 = arith.divf %75, %76 : vector<16x1xf32>
    %78 = vector.broadcast %77 : vector<16x1xf32> to vector<16x128xf32>
    %79 = arith.subf %69, %78 : vector<16x128xf32>
    %80 = arith.mulf %79, %79 : vector<16x128xf32>
    %cst_28 = arith.constant dense<0.000000e+00> : vector<16xf32>
    %81 = vector.multi_reduction <add>, %80, %cst_28 [1] : vector<16x128xf32> to vector<16xf32>
    %82 = vector.shape_cast %81 : vector<16xf32> to vector<16x1xf32>
    %cst_29 = arith.constant 1.280000e+02 : f32
    %83 = vector.broadcast %cst_29 : f32 to vector<16x1xf32>
    %84 = arith.divf %82, %83 : vector<16x1xf32>
    %cst_30 = arith.constant 9.99999997E-7 : f32
    %85 = vector.broadcast %cst_30 : f32 to vector<16x1xf32>
    %86 = arith.addf %84, %85 : vector<16x1xf32>
    %87 = math.rsqrt %86 : vector<16x1xf32>
    %88 = vector.broadcast %87 : vector<16x1xf32> to vector<16x128xf32>
    %89 = arith.mulf %79, %88 : vector<16x128xf32>
    %90 = vector.broadcast %71 : vector<1x128xf32> to vector<16x128xf32>
    %91 = arith.mulf %89, %90 : vector<16x128xf32>
    %92 = vector.broadcast %73 : vector<1x128xf32> to vector<16x128xf32>
    %93 = arith.addf %91, %92 : vector<16x128xf32>
    %c0_31 = arith.constant 0 : index
    %c0_32 = arith.constant 0 : index
    %c0_33 = arith.constant 0 : index
    %94 = vector.load %arg7[%c0_31, %c0_32, %c0_33] : memref<1x128x256xbf16, #tpu.memory_space<vmem>>, vector<1x128x256xbf16>
    %95 = vector.shape_cast %94 : vector<1x128x256xbf16> to vector<128x256xbf16>
    %c0_34 = arith.constant 0 : index
    %c0_35 = arith.constant 0 : index
    %c0_36 = arith.constant 0 : index
    %96 = vector.load %arg9[%c0_34, %c0_35, %c0_36] : memref<1x256x128xbf16, #tpu.memory_space<vmem>>, vector<1x256x128xbf16>
    %97 = vector.shape_cast %96 : vector<1x256x128xbf16> to vector<256x128xbf16>
    %c0_37 = arith.constant 0 : index
    %c0_38 = arith.constant 0 : index
    %c0_39 = arith.constant 0 : index
    %98 = vector.load %arg8[%c0_37, %c0_38, %c0_39] : memref<1x1x256xf32, #tpu.memory_space<vmem>>, vector<1x1x256xf32>
    %99 = vector.shape_cast %98 : vector<1x1x256xf32> to vector<1x256xf32>
    %c0_40 = arith.constant 0 : index
    %c0_41 = arith.constant 0 : index
    %c0_42 = arith.constant 0 : index
    %100 = vector.load %arg10[%c0_40, %c0_41, %c0_42] : memref<1x1x128xf32, #tpu.memory_space<vmem>>, vector<1x1x128xf32>
    %101 = vector.shape_cast %100 : vector<1x1x128xf32> to vector<1x128xf32>
    %c0_43 = arith.constant 0 : index
    %c0_44 = arith.constant 0 : index
    %c0_45 = arith.constant 0 : index
    %102 = vector.load %arg11[%c0_43, %c0_44, %c0_45] : memref<1x1x128xf32, #tpu.memory_space<vmem>>, vector<1x1x128xf32>
    %103 = vector.shape_cast %102 : vector<1x1x128xf32> to vector<1x128xf32>
    %104 = arith.truncf %93 : vector<16x128xf32> to vector<16x128xbf16>
    %cst_46 = arith.constant dense<0.000000e+00> : vector<16x256xf32>
    %105 = tpu.matmul %104, %95, %cst_46 {dimension_numbers = #tpu.dot_dimension_numbers<[1], [0], [0], [1], [0, 0, 1, 1], [], []>} : vector<16x128xbf16>, vector<128x256xbf16>, vector<16x256xf32> -> vector<16x256xf32>
    %106 = vector.broadcast %99 : vector<1x256xf32> to vector<16x256xf32>
    %107 = arith.addf %105, %106 : vector<16x256xf32>
    %cst_47 = arith.constant 5.000000e-01 : f32
    %108 = vector.broadcast %cst_47 : f32 to vector<16x256xf32>
    %109 = arith.mulf %108, %107 : vector<16x256xf32>
    %cst_48 = arith.constant 4.471500e-02 : f32
    %110 = vector.broadcast %cst_48 : f32 to vector<16x256xf32>
    %111 = arith.mulf %110, %107 : vector<16x256xf32>
    %112 = arith.mulf %111, %107 : vector<16x256xf32>
    %113 = arith.mulf %112, %107 : vector<16x256xf32>
    %114 = arith.addf %107, %113 : vector<16x256xf32>
    %cst_49 = arith.constant 0.797884583 : f32
    %115 = vector.broadcast %cst_49 : f32 to vector<16x256xf32>
    %116 = arith.mulf %115, %114 : vector<16x256xf32>
    %117 = math.tanh %116 : vector<16x256xf32>
    %cst_50 = arith.constant 1.000000e+00 : f32
    %118 = vector.broadcast %cst_50 : f32 to vector<16x256xf32>
    %119 = arith.addf %118, %117 : vector<16x256xf32>
    %120 = arith.mulf %109, %119 : vector<16x256xf32>
    %121 = arith.truncf %120 : vector<16x256xf32> to vector<16x256xbf16>
    %cst_51 = arith.constant dense<0.000000e+00> : vector<16x128xf32>
    %122 = tpu.matmul %121, %97, %cst_51 {dimension_numbers = #tpu.dot_dimension_numbers<[1], [0], [0], [1], [0, 0, 1, 1], [], []>} : vector<16x256xbf16>, vector<256x128xbf16>, vector<16x128xf32> -> vector<16x128xf32>
    %123 = vector.broadcast %101 : vector<1x128xf32> to vector<16x128xf32>
    %124 = arith.addf %122, %123 : vector<16x128xf32>
    %125 = vector.broadcast %103 : vector<1x128xf32> to vector<16x128xf32>
    %126 = arith.mulf %125, %124 : vector<16x128xf32>
    %127 = arith.addf %3, %126 : vector<16x128xf32>
    %c0_52 = arith.constant 0 : index
    %c0_53 = arith.constant 0 : index
    %128 = vector.load %arg13[%c0_52, %c0_53] : memref<16x128xf32, #tpu.memory_space<vmem>>, vector<16x128xf32>
    tpu.vector_store %arg13[%c0_52, %c0_53], %127 {strides = array<i32>} : memref<16x128xf32, #tpu.memory_space<vmem>>, vector<16x128xf32>,
    %c1_i32_54 = arith.constant 1 : i32
    %129 = arith.cmpi eq, %arg1, %c1_i32_54 : i32
    %130 = arith.extui %129 : i1 to i32
    %c0_i32_55 = arith.constant 0 : i32
    %131 = arith.cmpi ne, %130, %c0_i32_55 : i32
    scf.if %131 {
      %c0_56 = arith.constant 0 : index
      %c0_57 = arith.constant 0 : index
      %132 = vector.load %arg13[%c0_56, %c0_57] : memref<16x128xf32, #tpu.memory_space<vmem>>, vector<16x128xf32>
      %c0_58 = arith.constant 0 : index
      %c0_59 = arith.constant 0 : index
      %c0_60 = arith.constant 0 : index
      %133 = vector.load %arg12[%c0_58, %c0_59, %c0_60] : memref<1x16x128xf32, #tpu.memory_space<vmem>>, vector<1x16x128xf32>
      %134 = vector.shape_cast %133 : vector<1x16x128xf32> to vector<16x128xf32>
      %135 = vector.shape_cast %132 : vector<16x128xf32> to vector<1x16x128xf32>
      tpu.vector_store %arg12[%c0_58, %c0_59, %c0_60], %135 {strides = array<i32>} : memref<1x16x128xf32, #tpu.memory_space<vmem>>, vector<1x16x128xf32>,
    } else {
    }
    return
  }
  func.func @transform_0(%arg0: i32, %arg1: i32) -> (i32, i32, i32) {
    %c0_i32 = arith.constant 0 : i32
    %c0_i32_0 = arith.constant 0 : i32
    %c0_i32_1 = arith.constant 0 : i32
    return %arg0, %c0_i32, %c0_i32_0 : i32, i32, i32
  }
  func.func @transform_1(%arg0: i32, %arg1: i32) -> (i32, i32, i32) {
    %c0_i32 = arith.constant 0 : i32
    %c0_i32_0 = arith.constant 0 : i32
    %c0_i32_1 = arith.constant 0 : i32
    return %arg1, %c0_i32, %c0_i32_0 : i32, i32, i32
  }
  func.func @transform_2(%arg0: i32, %arg1: i32) -> (i32, i32, i32) {
    %c0_i32 = arith.constant 0 : i32
    %c0_i32_0 = arith.constant 0 : i32
    %c0_i32_1 = arith.constant 0 : i32
    return %arg1, %c0_i32, %c0_i32_0 : i32, i32, i32
  }
  func.func @transform_3(%arg0: i32, %arg1: i32) -> (i32, i32, i32) {
    %c0_i32 = arith.constant 0 : i32
    %c0_i32_0 = arith.constant 0 : i32
    %c0_i32_1 = arith.constant 0 : i32
    return %arg1, %c0_i32, %c0_i32_0 : i32, i32, i32
  }
  func.func @transform_4(%arg0: i32, %arg1: i32) -> (i32, i32, i32) {
    %c0_i32 = arith.constant 0 : i32
    %c0_i32_0 = arith.constant 0 : i32
    %c0_i32_1 = arith.constant 0 : i32
    return %arg1, %c0_i32, %c0_i32_0 : i32, i32, i32
  }
  func.func @transform_5(%arg0: i32, %arg1: i32) -> (i32, i32, i32) {
    %c0_i32 = arith.constant 0 : i32
    %c0_i32_0 = arith.constant 0 : i32
    %c0_i32_1 = arith.constant 0 : i32
    return %arg1, %c0_i32, %c0_i32_0 : i32, i32, i32
  }
  func.func @transform_6(%arg0: i32, %arg1: i32) -> (i32, i32, i32) {
    %c0_i32 = arith.constant 0 : i32
    %c0_i32_0 = arith.constant 0 : i32
    %c0_i32_1 = arith.constant 0 : i32
    return %arg1, %c0_i32, %c0_i32_0 : i32, i32, i32
  }
  func.func @transform_7(%arg0: i32, %arg1: i32) -> (i32, i32, i32) {
    %c0_i32 = arith.constant 0 : i32
    %c0_i32_0 = arith.constant 0 : i32
    %c0_i32_1 = arith.constant 0 : i32
    return %arg1, %c0_i32, %c0_i32_0 : i32, i32, i32
  }
  func.func @transform_8(%arg0: i32, %arg1: i32) -> (i32, i32, i32) {
    %c0_i32 = arith.constant 0 : i32
    %c0_i32_0 = arith.constant 0 : i32
    %c0_i32_1 = arith.constant 0 : i32
    return %arg1, %c0_i32, %c0_i32_0 : i32, i32, i32
  }
  func.func @transform_9(%arg0: i32, %arg1: i32) -> (i32, i32, i32) {
    %c0_i32 = arith.constant 0 : i32
    %c0_i32_0 = arith.constant 0 : i32
    %c0_i32_1 = arith.constant 0 : i32
    return %arg1, %c0_i32, %c0_i32_0 : i32, i32, i32
  }
  func.func @transform_10(%arg0: i32, %arg1: i32) -> (i32, i32, i32) {
    %c0_i32 = arith.constant 0 : i32
    %c0_i32_0 = arith.constant 0 : i32
    %c0_i32_1 = arith.constant 0 : i32
    return %arg0, %c0_i32, %c0_i32_0 : i32, i32, i32
  }
}

module attributes {stable_mosaic.version = 11 : i64} {
  func.func @head_kernel(%arg0: i32, %arg1: memref<1x17x128xf32, #tpu.memory_space<vmem>>, %arg2: memref<1x128xf32, #tpu.memory_space<vmem>>, %arg3: memref<1x128xf32, #tpu.memory_space<vmem>>, %arg4: memref<128x128xbf16, #tpu.memory_space<vmem>>, %arg5: memref<1x128xf32, #tpu.memory_space<vmem>>, %arg6: memref<1x17x128xf32, #tpu.memory_space<vmem>>) attributes {dimension_semantics = [#tpu.dimension_semantics<parallel>], iteration_bounds = array<i64: 2>, scalar_prefetch = 0 : i64, scratch_operands = 0 : i64, tpu.core_type = #tpu.core_type<tc>, window_params = [{transform_indices = @transform_0, window_bounds = array<i64: 1, 17, 128>}, {pipeline_mode = #tpu.pipeline_mode<synchronous>, transform_indices = @transform_1, window_bounds = array<i64: 1, 128>}, {pipeline_mode = #tpu.pipeline_mode<synchronous>, transform_indices = @transform_2, window_bounds = array<i64: 1, 128>}, {pipeline_mode = #tpu.pipeline_mode<synchronous>, transform_indices = @transform_3, window_bounds = array<i64: 128, 128>}, {pipeline_mode = #tpu.pipeline_mode<synchronous>, transform_indices = @transform_4, window_bounds = array<i64: 1, 128>}, {transform_indices = @transform_5, window_bounds = array<i64: 1, 17, 128>}]} {
    %c0 = arith.constant 0 : index
    %c0_0 = arith.constant 0 : index
    %c0_1 = arith.constant 0 : index
    %0 = vector.load %arg1[%c0, %c0_0, %c0_1] : memref<1x17x128xf32, #tpu.memory_space<vmem>>, vector<1x17x128xf32>
    %1 = vector.shape_cast %0 : vector<1x17x128xf32> to vector<17x128xf32>
    %c0_2 = arith.constant 0 : index
    %c0_3 = arith.constant 0 : index
    %2 = vector.load %arg2[%c0_2, %c0_3] : memref<1x128xf32, #tpu.memory_space<vmem>>, vector<1x128xf32>
    %c0_4 = arith.constant 0 : index
    %c0_5 = arith.constant 0 : index
    %3 = vector.load %arg3[%c0_4, %c0_5] : memref<1x128xf32, #tpu.memory_space<vmem>>, vector<1x128xf32>
    %cst = arith.constant dense<0.000000e+00> : vector<17xf32>
    %4 = vector.multi_reduction <add>, %1, %cst [1] : vector<17x128xf32> to vector<17xf32>
    %5 = vector.shape_cast %4 : vector<17xf32> to vector<17x1xf32>
    %cst_6 = arith.constant 1.280000e+02 : f32
    %6 = vector.broadcast %cst_6 : f32 to vector<17x1xf32>
    %7 = arith.divf %5, %6 : vector<17x1xf32>
    %8 = vector.broadcast %7 : vector<17x1xf32> to vector<17x128xf32>
    %9 = arith.subf %1, %8 : vector<17x128xf32>
    %10 = arith.mulf %9, %9 : vector<17x128xf32>
    %cst_7 = arith.constant dense<0.000000e+00> : vector<17xf32>
    %11 = vector.multi_reduction <add>, %10, %cst_7 [1] : vector<17x128xf32> to vector<17xf32>
    %12 = vector.shape_cast %11 : vector<17xf32> to vector<17x1xf32>
    %cst_8 = arith.constant 1.280000e+02 : f32
    %13 = vector.broadcast %cst_8 : f32 to vector<17x1xf32>
    %14 = arith.divf %12, %13 : vector<17x1xf32>
    %cst_9 = arith.constant 9.99999997E-7 : f32
    %15 = vector.broadcast %cst_9 : f32 to vector<17x1xf32>
    %16 = arith.addf %14, %15 : vector<17x1xf32>
    %17 = math.rsqrt %16 : vector<17x1xf32>
    %18 = vector.broadcast %17 : vector<17x1xf32> to vector<17x128xf32>
    %19 = arith.mulf %9, %18 : vector<17x128xf32>
    %20 = vector.broadcast %2 : vector<1x128xf32> to vector<17x128xf32>
    %21 = arith.mulf %19, %20 : vector<17x128xf32>
    %22 = vector.broadcast %3 : vector<1x128xf32> to vector<17x128xf32>
    %23 = arith.addf %21, %22 : vector<17x128xf32>
    %24 = arith.truncf %23 : vector<17x128xf32> to vector<17x128xbf16>
    %c0_10 = arith.constant 0 : index
    %c0_11 = arith.constant 0 : index
    %25 = vector.load %arg4[%c0_10, %c0_11] : memref<128x128xbf16, #tpu.memory_space<vmem>>, vector<128x128xbf16>
    %cst_12 = arith.constant dense<0.000000e+00> : vector<17x128xf32>
    %26 = tpu.matmul %24, %25, %cst_12 {dimension_numbers = #tpu.dot_dimension_numbers<[1], [0], [0], [1], [0, 0, 1, 1], [], []>} : vector<17x128xbf16>, vector<128x128xbf16>, vector<17x128xf32> -> vector<17x128xf32>
    %c0_13 = arith.constant 0 : index
    %c0_14 = arith.constant 0 : index
    %27 = vector.load %arg5[%c0_13, %c0_14] : memref<1x128xf32, #tpu.memory_space<vmem>>, vector<1x128xf32>
    %28 = vector.broadcast %27 : vector<1x128xf32> to vector<17x128xf32>
    %29 = arith.addf %26, %28 : vector<17x128xf32>
    %30 = tpu.iota {dimensions = array<i32: 1>} : vector<17x128xi32>
    %31 = math.exp %29 : vector<17x128xf32>
    %cst_15 = arith.constant 1.000000e+02 : f32
    %32 = vector.broadcast %cst_15 : f32 to vector<17x128xf32>
    %33 = arith.minimumf %31, %32 : vector<17x128xf32>
    %34 = math.sin %29 : vector<17x128xf32>
    %cst_16 = arith.constant 3.14159274 : f32
    %35 = vector.broadcast %cst_16 : f32 to vector<17x128xf32>
    %36 = arith.mulf %35, %34 : vector<17x128xf32>
    %c64_i32 = arith.constant 64 : i32
    %37 = vector.broadcast %c64_i32 : i32 to vector<17x128xi32>
    %38 = arith.cmpi slt, %30, %37 : vector<17x128xi32>
    %39 = arith.select %38, %33, %36 : vector<17x128xi1>, vector<17x128xf32>
    %c0_17 = arith.constant 0 : index
    %c0_18 = arith.constant 0 : index
    %c0_19 = arith.constant 0 : index
    %40 = vector.load %arg6[%c0_17, %c0_18, %c0_19] : memref<1x17x128xf32, #tpu.memory_space<vmem>>, vector<1x17x128xf32>
    %41 = vector.shape_cast %40 : vector<1x17x128xf32> to vector<17x128xf32>
    %42 = vector.shape_cast %39 : vector<17x128xf32> to vector<1x17x128xf32>
    tpu.vector_store %arg6[%c0_17, %c0_18, %c0_19], %42 {strides = array<i32>} : memref<1x17x128xf32, #tpu.memory_space<vmem>>, vector<1x17x128xf32>,
    return
  }
  func.func @transform_0(%arg0: i32) -> (i32, i32, i32) {
    %c0_i32 = arith.constant 0 : i32
    %c0_i32_0 = arith.constant 0 : i32
    %c0_i32_1 = arith.constant 0 : i32
    return %arg0, %c0_i32, %c0_i32_0 : i32, i32, i32
  }
  func.func @transform_1(%arg0: i32) -> (i32, i32) {
    %c0_i32 = arith.constant 0 : i32
    %c0_i32_0 = arith.constant 0 : i32
    %c0_i32_1 = arith.constant 0 : i32
    return %c0_i32, %c0_i32_0 : i32, i32
  }
  func.func @transform_2(%arg0: i32) -> (i32, i32) {
    %c0_i32 = arith.constant 0 : i32
    %c0_i32_0 = arith.constant 0 : i32
    %c0_i32_1 = arith.constant 0 : i32
    return %c0_i32, %c0_i32_0 : i32, i32
  }
  func.func @transform_3(%arg0: i32) -> (i32, i32) {
    %c0_i32 = arith.constant 0 : i32
    %c0_i32_0 = arith.constant 0 : i32
    %c0_i32_1 = arith.constant 0 : i32
    return %c0_i32, %c0_i32_0 : i32, i32
  }
  func.func @transform_4(%arg0: i32) -> (i32, i32) {
    %c0_i32 = arith.constant 0 : i32
    %c0_i32_0 = arith.constant 0 : i32
    %c0_i32_1 = arith.constant 0 : i32
    return %c0_i32, %c0_i32_0 : i32, i32
  }
  func.func @transform_5(%arg0: i32) -> (i32, i32, i32) {
    %c0_i32 = arith.constant 0 : i32
    %c0_i32_0 = arith.constant 0 : i32
    %c0_i32_1 = arith.constant 0 : i32
    return %arg0, %c0_i32, %c0_i32_0 : i32, i32, i32
  }
}

</mosaic_0001>

<llo_original>
// kernel: vocos_decoder_forward.3
$region0: #{vocos_decoder_forward.3}
  #allocation0 [shape = 'u32[]', space=smem, size = 0x4, offset = 0x4, fixed_abs, tag = 'smem constant byte address 0x4 - core index']
  #allocation1 [shape = 'u32[144,128]{1,0:T(1,128)}', space=vmem, size = 0x12000, scoped, tag = 'internal scratch']
  %s0 = inlined_call_operand.hbm [shape: f32[2,16,64], index: 0, kind: input, shape index: {}]
  %s1 = inlined_call_operand.hbm [shape: bf16[448,128], index: 1, kind: input, shape index: {}]
  %s2 = inlined_call_operand.hbm [shape: f32[1,128], index: 2, kind: input, shape index: {}]
  %s3 = inlined_call_operand.vmem [shape: f32[2,16,128], index: 3, kind: output, shape index: {}]
  %s4 = sld [smem:[#allocation0]]
  $region57: #{vocos_decoder_forward.3} parent=0
    _
  %s6 = ssub.s32 1, %s4
  %s7 = scalar_select 0, %s6, %s4
  $region1: #{vocos_decoder_forward.3} parent=0
    #allocation2 [shape = 'u8[16384]{0}', space=vmem, size = 0x4000, scoped, tag = 'input window, operand 0']
    #allocation3 [shape = 's32[2]{0}', space=sflag, size = 0x8, scoped, tag = 'scoped memory for vocos_decoder_forward.3']
    #allocation4 [shape = 'u8[114688]{0}', space=vmem, size = 0x1c000, scoped, tag = 'input window, operand 1, single buffered']
    #allocation5 [shape = 's32[1]{0}', space=sflag, size = 0x4, scoped, tag = 'scoped memory for vocos_decoder_forward.3']
    #allocation6 [shape = 'u8[512]{0}', space=vmem, size = 0x400, scoped, tag = 'input window, operand 2, single buffered']
    %8 = vsyncpa [#allocation3], 0
    %s9 = scalar_lea.sflag [#allocation3], 1
    %10 = vsyncpa %s9, 0
    %11 = vsyncpa [#allocation5], 0
    loop: start=0, step=1, limit=4
    $region2: #{vocos_decoder_forward.3} parent=1 // loop_pre_header
      _
    $region3: #{vocos_decoder_forward.3} parent=1 // loop_header
      %s13 = sphi 0, %s17
      %p14 = scmp.ge.s32.totalorder %s13, 4
      %s23 = sphi 0, %s25
      %s26 = sphi 0, %s23
      %s27 = sphi 0, %s26
      %s43 = sphi 0, %s27
      %s47 = sphi 0, %s47
      %s49 = sphi 0, %s47
      %s50 = sphi 0, %s49
      %s64 = sphi 0, %s50
      %s68 = sphi 0, %s68
      %s70 = sphi 0, %s68
      %s71 = sphi 0, %s70
      %s85 = sphi 0, %s71
      %s91 = sphi 0, %s93
      %s94 = sphi 0, %s91
      %s95 = sphi 0, %s94
      %s111 = sphi 0, %s95
    $region4: #{vocos_decoder_forward.3} parent=1 // loop_header_branch
      %16 = sbr.rel (%p14) target = $region8
    $region5: #{vocos_decoder_forward.3} parent=1 // loop_body
      %s18 = ssub.s32 %s13, 1
      %s19 = ssub.s32 %s13, 2
      %s20 = sadd.s32 %s13, 1
      %s21 = ssub.s32 %s13, %s20
      %p22 = scmp.eq.s32.totalorder %s21, 0
      %s24 = sadd.s32 %s23, 1
      %s25 = scalar_select %p22, %s23, %s24
      %p28 = pneg %p22
      %p29 = scmp.eq.s32.totalorder %s13, 1
      %p30 = por %p28, %p29
      %p31 = scmp.ne.s32.totalorder %s23, %s26
      %p32 = scmp.eq.s32.totalorder %s13, 0
      %p33 = por %p31, %p32
      %p34 = scmp.ne.s32.totalorder %s23, %s26
      %p35 = scmp.eq.s32.totalorder %s18, 1
      %p36 = por %p34, %p35
      %p37 = scmp.ne.s32.totalorder %s26, %s27
      %p38 = scmp.eq.s32.totalorder %s18, 0
      %p39 = por %p37, %p38
      %p40 = scmp.ne.s32.totalorder %s26, %s27
      %p41 = scmp.eq.s32.totalorder %s19, 1
      %p42 = por %p40, %p41
      %p44 = scmp.ne.s32.totalorder %s27, %s43
      %p45 = scmp.eq.s32.totalorder %s19, 0
      %p46 = por %p44, %p45
      %s48 = sadd.s32 %s47, 1
      %p51 = scmp.eq.s32.totalorder %s13, 1
      %p52 = scmp.ne.s32.totalorder %s47, %s49
      %p53 = scmp.eq.s32.totalorder %s13, 0
      %p54 = por %p52, %p53
      %p55 = scmp.ne.s32.totalorder %s47, %s49
      %p56 = scmp.eq.s32.totalorder %s18, 1
      %p57 = por %p55, %p56
      %p58 = scmp.ne.s32.totalorder %s49, %s50
      %p59 = scmp.eq.s32.totalorder %s18, 0
      %p60 = por %p58, %p59
      %p61 = scmp.ne.s32.totalorder %s49, %s50
      %p62 = scmp.eq.s32.totalorder %s19, 1
      %p63 = por %p61, %p62
      %p65 = scmp.ne.s32.totalorder %s50, %s64
      %p66 = scmp.eq.s32.totalorder %s19, 0
      %p67 = por %p65, %p66
      %s69 = sadd.s32 %s68, 1
      %p72 = scmp.eq.s32.totalorder %s13, 1
      %p73 = scmp.ne.s32.totalorder %s68, %s70
      %p74 = scmp.eq.s32.totalorder %s13, 0
      %p75 = por %p73, %p74
      %p76 = scmp.ne.s32.totalorder %s68, %s70
      %p77 = scmp.eq.s32.totalorder %s18, 1
      %p78 = por %p76, %p77
      %p79 = scmp.ne.s32.totalorder %s70, %s71
      %p80 = scmp.eq.s32.totalorder %s18, 0
      %p81 = por %p79, %p80
      %p82 = scmp.ne.s32.totalorder %s70, %s71
      %p83 = scmp.eq.s32.totalorder %s19, 1
      %p84 = por %p82, %p83
      %p86 = scmp.ne.s32.totalorder %s71, %s85
      %p87 = scmp.eq.s32.totalorder %s19, 0
      %p88 = por %p86, %p87
      %s89 = ssub.s32 %s13, %s20
      %p90 = scmp.eq.s32.totalorder %s89, 0
      %s92 = sadd.s32 %s91, 1
      %s93 = scalar_select %p90, %s91, %s92
      %p96 = pneg %p90
      %p97 = scmp.eq.s32.totalorder %s13, 1
      %p98 = por %p96, %p97
      %p99 = scmp.ne.s32.totalorder %s91, %s94
      %p100 = scmp.eq.s32.totalorder %s13, 0
      %p101 = por %p99, %p100
      %p102 = scmp.ne.s32.totalorder %s91, %s94
      %p103 = scmp.eq.s32.totalorder %s18, 1
      %p104 = por %p102, %p103
      %p105 = scmp.ne.s32.totalorder %s94, %s95
      %p106 = scmp.eq.s32.totalorder %s18, 0
      %p107 = por %p105, %p106
      %p108 = scmp.ne.s32.totalorder %s94, %s95
      %p109 = scmp.eq.s32.totalorder %s19, 1
      %p110 = por %p108, %p109
      %p112 = scmp.ne.s32.totalorder %s95, %s111
      %p113 = scmp.eq.s32.totalorder %s19, 0
      %p114 = por %p112, %p113
      %p115 = scmp.le.s32.totalorder 1, %s13
      %p116 = scmp.lt.s32.totalorder %s13, 3
      %p117 = pnand %p115, %p116
      %p118 = pneg %p117
      // Predicated region
      $region9: #{vocos_decoder_forward.3} parent=5 // pred_check
        _
      $region10: #{vocos_decoder_forward.3} parent=5 // pred_check_branch
        %120 = sbr.rel (%p117) target = $region12
      $region11: #{vocos_decoder_forward.3} parent=5 // pred_region
        %s121 = ssub.s32 %s13, 1
        // Predicated region
        $region13: #{vocos_decoder_forward.3} parent=11 // pred_check
          %p122 = pneg %p60
        $region14: #{vocos_decoder_forward.3} parent=11 // pred_check_branch
          %124 = sbr.rel (%p122) target = $region16
        $region15: #{vocos_decoder_forward.3} parent=11 // pred_region
          %s126 = ssub.s32 3584, 3584
          %127 = vsyncadd [#allocation5], %s126
          %s128 = sshll.u32 [#allocation4], 4
          %s129 = int_to_ptr.vmem [resolvable:$true] %s128
          %134 = dma.hbm_to_vmem [thread:$0]  %s1, 3584, %s129, [#allocation5], 64, 64, 4
        $region16: #{vocos_decoder_forward.3} parent=11 // pred_fallthru
          _
        // Predicated region
        $region17: #{vocos_decoder_forward.3} parent=11 // pred_check
          %p135 = pneg %p81
        $region18: #{vocos_decoder_forward.3} parent=11 // pred_check_branch
          %137 = sbr.rel (%p135) target = $region20
        $region19: #{vocos_decoder_forward.3} parent=11 // pred_region
          %s139 = ssub.s32 16, 16
          %140 = vsyncadd [#allocation5], %s139
          %s142 = sshll.u32 [#allocation6], 4
          %s143 = int_to_ptr.vmem [resolvable:$true] %s142
          %145 = dma.hbm_to_vmem [thread:$0]  %s2, 16, %s143, [#allocation5]
        $region20: #{vocos_decoder_forward.3} parent=11 // pred_fallthru
          _
      $region12: #{vocos_decoder_forward.3} parent=5 // pred_fallthru
        _
      %p146 = scmp.lt.s32.totalorder %s13, 2
      // Predicated region
      $region21: #{vocos_decoder_forward.3} parent=5 // pred_check
        %p147 = pneg %p146
      $region22: #{vocos_decoder_forward.3} parent=5 // pred_check_branch
        %149 = sbr.rel (%p147) target = $region24
      $region23: #{vocos_decoder_forward.3} parent=5 // pred_region
        // Predicated region
        $region25: #{vocos_decoder_forward.3} parent=23 // pred_check
          %p150 = pneg %p33
        $region26: #{vocos_decoder_forward.3} parent=23 // pred_check_branch
          %152 = sbr.rel (%p150) target = $region28
        $region27: #{vocos_decoder_forward.3} parent=23 // pred_region
          %s153 = sand.u32 %s23, 1
          %s154 = scalar_lea.sflag [#allocation3], %s153
          %s155 = sand.u32 %s23, 1
          %s156 = smul.addr %s155, 16
          %s157 = scalar_lea.vmem [#allocation2], %s156
          %s159 = ssub.s32 256, 256
          %160 = vsyncadd %s154, %s159
          %s161 = smul.addr %s13, 2
          %s162 = smul.addr %s161, 128
          %s163 = scalar_lea.hbm %s0, %s162
          %s164 = sshll.u32 %s157, 4
          %s165 = int_to_ptr.vmem [resolvable:$true] %s164
          %170 = dma.hbm_to_vmem [thread:$0]  %s163, 256, %s165, %s154, 128, 128, 8
        $region28: #{vocos_decoder_forward.3} parent=23 // pred_fallthru
          _
      $region24: #{vocos_decoder_forward.3} parent=5 // pred_fallthru
        _
      %p171 = scmp.le.s32.totalorder 1, %s13
      %p172 = scmp.lt.s32.totalorder %s13, 3
      %p173 = pnand %p171, %p172
      %p174 = pneg %p173
      // Predicated region
      $region29: #{vocos_decoder_forward.3} parent=5 // pred_check
        _
      $region30: #{vocos_decoder_forward.3} parent=5 // pred_check_branch
        %176 = sbr.rel (%p173) target = $region32
      $region31: #{vocos_decoder_forward.3} parent=5 // pred_region
        %s177 = ssub.s32 %s13, 1
        %s178 = sand.u32 %s26, 1
        %s179 = scalar_lea.sflag [#allocation3], %s178
        %s180 = sand.u32 %s26, 1
        %s181 = smul.addr %s180, 16
        %s182 = scalar_lea.vmem [#allocation2], %s181
        // Predicated region
        $region33: #{vocos_decoder_forward.3} parent=31 // pred_check
          %p183 = pneg %p39
        $region34: #{vocos_decoder_forward.3} parent=31 // pred_check_branch
          %185 = sbr.rel (%p183) target = $region36
        $region35: #{vocos_decoder_forward.3} parent=31 // pred_region
          %186 = dma.done %s179, 256
        $region36: #{vocos_decoder_forward.3} parent=31 // pred_fallthru
          _
        // Predicated region
        $region37: #{vocos_decoder_forward.3} parent=31 // pred_check
          %p187 = pneg %p60
        $region38: #{vocos_decoder_forward.3} parent=31 // pred_check_branch
          %189 = sbr.rel (%p187) target = $region40
        $region39: #{vocos_decoder_forward.3} parent=31 // pred_region
          %190 = dma.done [#allocation5], 3584
        $region40: #{vocos_decoder_forward.3} parent=31 // pred_fallthru
          _
        // Predicated region
        $region41: #{vocos_decoder_forward.3} parent=31 // pred_check
          %p191 = pneg %p81
        $region42: #{vocos_decoder_forward.3} parent=31 // pred_check_branch
          %193 = sbr.rel (%p191) target = $region44
        $region43: #{vocos_decoder_forward.3} parent=31 // pred_region
          %194 = dma.done [#allocation5], 16
        $region44: #{vocos_decoder_forward.3} parent=31 // pred_fallthru
          _
        %s195 = sand.u32 %s26, 1
        %s196 = scalar_lea.sflag [#allocation3], %s195
        %s197 = sand.u32 %s26, 1
        %s198 = smul.addr %s197, 16
        %s199 = scalar_lea.vmem [#allocation2], %s198
        %p200 = pneg %p39
        %p201 = pneg %p36
        %p202 = pneg %p60
        %p203 = pneg %p57
        %p204 = pneg %p81
        %p205 = pneg %p78
        %p206 = pneg %p107
        %p207 = pneg %p104
        %p208 = scmp.lt.s32.totalorder %s18, 1
        %s209 = scalar_select %p208, %s18, 1
        %s210 = smul.addr %s209, 2
        %s211 = smul.addr %s210, 8
        %s212 = scalar_lea.vmem %s3, %s211
        %p213 = scmp.lt.s32.totalorder %s18, 1
        %s214 = scalar_select %p213, %s18, 1
        %s215 = smul.addr %s214, 2
        %s216 = smul.addr %s215, 8
        %s217 = scalar_lea.vmem %s3, %s216
        %v219 = vld [vmem:[%s182] sm:$0xff]
        %v220 = vld [vmem:[%s182 + $0x8] sm:$0xff]
        %v221 = vlaneseq
        %v222 = vshrl.u32 %v221, 7
        %v223 = vadd.s32 %v222, 8
        %v224 = vrot.slane %v219, 5
        %v225 = vrot.slane %v220, 5
        %vm226 = vcmp.lt.s32.totalorder %v222, 3
        %v227 = vsel %vm226, %v224, %v225
        %v228 = vsel %vm226, %v225, %v224
        %vm229 = vcmp.ge.s32.totalorder %v222, 3
        %vm230 = vcmp.ge.s32.totalorder %v223, 3
        %v231 = vsel %vm229, %v228, 0.0
        %v232 = vsel %vm230, %v227, 0.0
        %v233 = vrot.slane %v219, 6
        %v234 = vrot.slane %v220, 6
        %vm235 = vcmp.lt.s32.totalorder %v222, 2
        %v236 = vsel %vm235, %v233, %v234
        %v237 = vsel %vm235, %v234, %v233
        %vm238 = vcmp.ge.s32.totalorder %v222, 2
        %vm239 = vcmp.ge.s32.totalorder %v223, 2
        %v240 = vsel %vm238, %v237, 0.0
        %v241 = vsel %vm239, %v236, 0.0
        %v242 = vrot.slane %v219, 7
        %v243 = vrot.slane %v220, 7
        %vm244 = vcmp.lt.s32.totalorder %v222, 1
        %v245 = vsel %vm244, %v242, %v243
        %v246 = vsel %vm244, %v243, %v242
        %vm247 = vcmp.ge.s32.totalorder %v222, 1
        %vm248 = vcmp.ge.s32.totalorder %v223, 1
        %v249 = vsel %vm247, %v246, 0.0
        %v250 = vsel %vm248, %v245, 0.0
        %v251 = vrot.slane %v219, 1
        %v252 = vrot.slane %v220, 1
        %vm253 = vcmp.lt.s32.totalorder %v222, 7
        %v254 = vsel %vm253, %v251, %v252
        %v255 = vsel %vm253, %v252, %v251
        %vm256 = vcmp.lt.s32.totalorder %v222, 15
        %vm257 = vcmp.lt.s32.totalorder %v223, 15
        %v258 = vsel %vm256, %v254, 0.0
        %v259 = vsel %vm257, %v255, 0.0
        %v260 = vrot.slane %v219, 2
        %v261 = vrot.slane %v220, 2
        %vm262 = vcmp.lt.s32.totalorder %v222, 6
        %v263 = vsel %vm262, %v260, %v261
        %v264 = vsel %vm262, %v261, %v260
        %vm265 = vcmp.lt.s32.totalorder %v222, 14
        %vm266 = vcmp.lt.s32.totalorder %v223, 14
        %v267 = vsel %vm265, %v263, 0.0
        %v268 = vsel %vm266, %v264, 0.0
        %v269 = vrot.slane %v219, 3
        %v270 = vrot.slane %v220, 3
        %vm271 = vcmp.lt.s32.totalorder %v222, 5
        %v272 = vsel %vm271, %v269, %v270
        %v273 = vsel %vm271, %v270, %v269
        %vm274 = vcmp.lt.s32.totalorder %v222, 13
        %vm275 = vcmp.lt.s32.totalorder %v223, 13
        %v276 = vsel %vm274, %v272, 0.0
        %v277 = vsel %vm275, %v273, 0.0
        %280 = vrot.lane.b32.xlu0 %v240, 64
        %v281 = vpop.permute.xlu0 %280
        %282 = vrot.lane.b32.xlu0 %v241, 64
        %v283 = vpop.permute.xlu0 %282
        %288 = vrot.lane.b32.xlu0 %v219, 64
        %v289 = vpop.permute.xlu0 %288
        %290 = vrot.lane.b32.xlu0 %v220, 64
        %v291 = vpop.permute.xlu0 %290
        %296 = vrot.lane.b32.xlu0 %v267, 64
        %v297 = vpop.permute.xlu0 %296
        %298 = vrot.lane.b32.xlu0 %v268, 64
        %v299 = vpop.permute.xlu0 %298
        %vm302 = vcmask 523264
        %v303 = vsel %vm302, %v231, %v281
        %v304 = vsel %vm302, %v232, %v283
        %v305 = vsel %vm302, %v249, %v289
        %v306 = vsel %vm302, %v250, %v291
        %v307 = vsel %vm302, %v258, %v297
        %v308 = vsel %vm302, %v259, %v299
        %v309 = vpack.c.bf16 %v304, %v303
        %v310 = vpack.c.bf16 %v306, %v305
        %v311 = vpack.c.bf16 %v308, %v307
        %v312 = vpack.c.bf16 %v277, %v276
        %v313 = vld [vmem:[#allocation4] sm:$0xf]
        %v314 = vld [vmem:[#allocation4 + $0x4] sm:$0xf]
        %v315 = vld [vmem:[#allocation4 + $0x8] sm:$0xf]
        %v316 = vld [vmem:[#allocation4 + $0xc] sm:$0xf]
        %v317 = vld [vmem:[#allocation4 + $0x10] sm:$0xf]
        %v318 = vld [vmem:[#allocation4 + $0x14] sm:$0xf]
        %v319 = vld [vmem:[#allocation4 + $0x18] sm:$0xf]
        %v320 = vld [vmem:[#allocation4 + $0x1c] sm:$0xf]
        %v321 = vld [vmem:[#allocation4 + $0x20] sm:$0xf]
        %v322 = vld [vmem:[#allocation4 + $0x24] sm:$0xf]
        %v323 = vld [vmem:[#allocation4 + $0x28] sm:$0xf]
        %v324 = vld [vmem:[#allocation4 + $0x2c] sm:$0xf]
        %v325 = vld [vmem:[#allocation4 + $0x30] sm:$0xf]
        %v326 = vld [vmem:[#allocation4 + $0x34] sm:$0xf]
        %v327 = vld [vmem:[#allocation4 + $0x38] sm:$0xf]
        %v328 = vld [vmem:[#allocation4 + $0x3c] sm:$0xf]
        %v329 = vld [vmem:[#allocation4 + $0x40] sm:$0xf]
        %v330 = vld [vmem:[#allocation4 + $0x44] sm:$0xf]
        %v331 = vld [vmem:[#allocation4 + $0x48] sm:$0xf]
        %v332 = vld [vmem:[#allocation4 + $0x4c] sm:$0xf]
        %v333 = vld [vmem:[#allocation4 + $0x50] sm:$0xf]
        %v334 = vld [vmem:[#allocation4 + $0x54] sm:$0xf]
        %v335 = vld [vmem:[#allocation4 + $0x58] sm:$0xf]
        %v336 = vld [vmem:[#allocation4 + $0x5c] sm:$0xf]
        %v337 = vld [vmem:[#allocation4 + $0x60] sm:$0xf]
        %v338 = vld [vmem:[#allocation4 + $0x64] sm:$0xf]
        %v339 = vld [vmem:[#allocation4 + $0x68] sm:$0xf]
        %v340 = vld [vmem:[#allocation4 + $0x6c] sm:$0xf]
        %v341 = vld [vmem:[#allocation4 + $0x70] sm:$0xf]
        %v342 = vld [vmem:[#allocation4 + $0x74] sm:$0xf]
        %v343 = vld [vmem:[#allocation4 + $0x78] sm:$0xf]
        %v344 = vld [vmem:[#allocation4 + $0x7c] sm:$0xf]
        %v345 = vld [vmem:[#allocation4 + $0x80] sm:$0xf]
        %v346 = vld [vmem:[#allocation4 + $0x84] sm:$0xf]
        %v347 = vld [vmem:[#allocation4 + $0x88] sm:$0xf]
        %v348 = vld [vmem:[#allocation4 + $0x8c] sm:$0xf]
        %v349 = vld [vmem:[#allocation4 + $0x90] sm:$0xf]
        %v350 = vld [vmem:[#allocation4 + $0x94] sm:$0xf]
        %v351 = vld [vmem:[#allocation4 + $0x98] sm:$0xf]
        %v352 = vld [vmem:[#allocation4 + $0x9c] sm:$0xf]
        %v353 = vld [vmem:[#allocation4 + $0xa0] sm:$0xf]
        %v354 = vld [vmem:[#allocation4 + $0xa4] sm:$0xf]
        %v355 = vld [vmem:[#allocation4 + $0xa8] sm:$0xf]
        %v356 = vld [vmem:[#allocation4 + $0xac] sm:$0xf]
        %v357 = vld [vmem:[#allocation4 + $0xb0] sm:$0xf]
        %v358 = vld [vmem:[#allocation4 + $0xb4] sm:$0xf]
        %v359 = vld [vmem:[#allocation4 + $0xb8] sm:$0xf]
        %v360 = vld [vmem:[#allocation4 + $0xbc] sm:$0xf]
        %v361 = vld [vmem:[#allocation4 + $0xc0] sm:$0xf]
        %v362 = vld [vmem:[#allocation4 + $0xc4] sm:$0xf]
        %v363 = vld [vmem:[#allocation4 + $0xc8] sm:$0xf]
        %v364 = vld [vmem:[#allocation4 + $0xcc] sm:$0xf]
        %v365 = vld [vmem:[#allocation4 + $0xd0] sm:$0xf]
        %v366 = vld [vmem:[#allocation4 + $0xd4] sm:$0xf]
        %v367 = vld [vmem:[#allocation4 + $0xd8] sm:$0xf]
        %v368 = vld [vmem:[#allocation4 + $0xdc] sm:$0xf]
        %v369 = vld [vmem:[#allocation6] sm:$0x1]
        %v371 = vlaneseq
        %v372 = vshrl.u32 %v371, 7
        %v373 = vsub.s32 0, %v372
        %v374 = vrot.slane %v369, %v373
        %v432 = vunpack.c.l.b16 %v313
        %v433 = vunpack.c.l.b16 %v314
        %v434 = vunpack.c.l.b16 %v315
        %v435 = vunpack.c.l.b16 %v316
        %v436 = vunpack.c.l.b16 %v317
        %v437 = vunpack.c.l.b16 %v318
        %v438 = vunpack.c.l.b16 %v319
        %v439 = vunpack.c.l.b16 %v320
        %v440 = vunpack.c.l.b16 %v321
        %v441 = vunpack.c.l.b16 %v322
        %v442 = vunpack.c.l.b16 %v323
        %v443 = vunpack.c.l.b16 %v324
        %v444 = vunpack.c.l.b16 %v325
        %v445 = vunpack.c.l.b16 %v326
        %v446 = vunpack.c.l.b16 %v327
        %v447 = vunpack.c.l.b16 %v328
        %v448 = vunpack.c.l.b16 %v329
        %v449 = vunpack.c.l.b16 %v330
        %v450 = vunpack.c.l.b16 %v331
        %v451 = vunpack.c.l.b16 %v332
        %v452 = vunpack.c.l.b16 %v333
        %v453 = vunpack.c.l.b16 %v334
        %v454 = vunpack.c.l.b16 %v335
        %v455 = vunpack.c.l.b16 %v336
        %v456 = vunpack.c.l.b16 %v337
        %v457 = vunpack.c.l.b16 %v338
        %v458 = vunpack.c.l.b16 %v339
        %v459 = vunpack.c.l.b16 %v340
        %v460 = vunpack.c.l.b16 %v341
        %v461 = vunpack.c.l.b16 %v342
        %v462 = vunpack.c.l.b16 %v343
        %v463 = vunpack.c.l.b16 %v344
        %v464 = vunpack.c.l.b16 %v345
        %v465 = vunpack.c.l.b16 %v346
        %v466 = vunpack.c.l.b16 %v347
        %v467 = vunpack.c.l.b16 %v348
        %v468 = vunpack.c.l.b16 %v349
        %v469 = vunpack.c.l.b16 %v350
        %v470 = vunpack.c.l.b16 %v351
        %v471 = vunpack.c.l.b16 %v352
        %v472 = vunpack.c.l.b16 %v353
        %v473 = vunpack.c.l.b16 %v354
        %v474 = vunpack.c.l.b16 %v355
        %v475 = vunpack.c.l.b16 %v356
        %v476 = vunpack.c.l.b16 %v357
        %v477 = vunpack.c.l.b16 %v358
        %v478 = vunpack.c.l.b16 %v359
        %v479 = vunpack.c.l.b16 %v360
        %v480 = vunpack.c.l.b16 %v361
        %v481 = vunpack.c.l.b16 %v362
        %v482 = vunpack.c.l.b16 %v363
        %v483 = vunpack.c.l.b16 %v364
        %v484 = vunpack.c.l.b16 %v365
        %v485 = vunpack.c.l.b16 %v366
        %v486 = vunpack.c.l.b16 %v367
        %v487 = vunpack.c.l.b16 %v368
        %v488 = vpack.c.b16 %v433, %v432
        %v489 = vpack.c.b16 %v435, %v434
        %v490 = vpack.c.b16 %v437, %v436
        %v491 = vpack.c.b16 %v439, %v438
        %v492 = vpack.c.b16 %v441, %v440
        %v493 = vpack.c.b16 %v443, %v442
        %v494 = vpack.c.b16 %v445, %v444
        %v495 = vpack.c.b16 %v447, %v446
        %v496 = vpack.c.b16 %v449, %v448
        %v497 = vpack.c.b16 %v451, %v450
        %v498 = vpack.c.b16 %v453, %v452
        %v499 = vpack.c.b16 %v455, %v454
        %v500 = vpack.c.b16 %v457, %v456
        %v501 = vpack.c.b16 %v459, %v458
        %v502 = vpack.c.b16 %v461, %v460
        %v503 = vpack.c.b16 %v463, %v462
        %v504 = vpack.c.b16 %v465, %v464
        %v505 = vpack.c.b16 %v467, %v466
        %v506 = vpack.c.b16 %v469, %v468
        %v507 = vpack.c.b16 %v471, %v470
        %v508 = vpack.c.b16 %v473, %v472
        %v509 = vpack.c.b16 %v475, %v474
        %v510 = vpack.c.b16 %v477, %v476
        %v511 = vpack.c.b16 %v479, %v478
        %v512 = vpack.c.b16 %v481, %v480
        %v513 = vpack.c.b16 %v483, %v482
        %v514 = vpack.c.b16 %v485, %v484
        %v515 = vpack.c.b16 %v487, %v486
        %v545 = vsel %vm302, %v312, 0
        %547 = vmatprep.subr.bf16.mxu0 0
        %548 = vmatpush1.bf16.msra.mxu0 %v488
        %549 = vmatprep.subr.bf16.mxu0 0
        %550 = vmatpush1.bf16.msra.mxu0 %v489
        %551 = vmatprep.subr.bf16.mxu0 0
        %552 = vmatpush1.bf16.msra.mxu0 %v490
        %553 = vmatprep.subr.bf16.mxu0 0
        %554 = vmatpush1.bf16.msra.mxu0 %v491
        %555 = vmatprep.subr.bf16.mxu0 0
        %556 = vmatpush1.bf16.msra.mxu0 %v492
        %557 = vmatprep.subr.bf16.mxu0 0
        %558 = vmatpush1.bf16.msra.mxu0 %v493
        %559 = vmatprep.subr.bf16.mxu0 0
        %560 = vmatpush1.bf16.msra.mxu0 %v494
        %561 = vmatprep.subr.bf16.mxu0 0
        %562 = vmatpush1.bf16.msra.mxu0 %v495
        %563 = vmatprep.subr.bf16.mxu0 0
        %564 = vmatpush1.bf16.msra.mxu0 %v496
        %565 = vmatprep.subr.bf16.mxu0 0
        %566 = vmatpush1.bf16.msra.mxu0 %v497
        %567 = vmatprep.subr.bf16.mxu0 0
        %568 = vmatpush1.bf16.msra.mxu0 %v498
        %569 = vmatprep.subr.bf16.mxu0 0
        %570 = vmatpush1.bf16.msra.mxu0 %v499
        %571 = vmatprep.subr.bf16.mxu0 0
        %572 = vmatpush1.bf16.msra.mxu0 %v500
        %573 = vmatprep.subr.bf16.mxu0 0
        %574 = vmatpush1.bf16.msra.mxu0 %v501
        %575 = vmatprep.subr.bf16.mxu0 0
        %576 = vmatpush1.bf16.msra.mxu0 %v502
        %577 = vmatprep.subr.bf16.mxu0 0
        %578 = vmatpush1.bf16.msra.mxu0 %v503
        %579 = vmatprep.mubr.bf16.mxu0 %v310
        %580 = vmatmul.mubr.bf16.gmra.mrb[0].mxu0 %v309
        %v581 = vpop.f32.mrb[0].mxu0
        %v582 = vadd.f32 %v374, %v581
        %v583 = vpop.f32.mrb[0].mxu0
        %v584 = vpop.f32.mrb[0].mxu0
        %v585 = vadd.f32 %v374, %v584
        %v586 = vpop.f32.mrb[0].mxu0
        %587 = vdwg.mxu0
        %588 = vmatprep.subr.bf16.mxu0 0
        %589 = vmatpush1.bf16.msra.mxu0 %v504
        %590 = vmatprep.subr.bf16.mxu0 0
        %591 = vmatpush1.bf16.msra.mxu0 %v505
        %592 = vmatprep.subr.bf16.mxu0 0
        %593 = vmatpush1.bf16.msra.mxu0 %v506
        %594 = vmatprep.subr.bf16.mxu0 0
        %595 = vmatpush1.bf16.msra.mxu0 %v507
        %596 = vmatprep.subr.bf16.mxu0 0
        %597 = vmatpush1.bf16.msra.mxu0 %v508
        %598 = vmatprep.subr.bf16.mxu0 0
        %599 = vmatpush1.bf16.msra.mxu0 %v509
        %600 = vmatprep.subr.bf16.mxu0 0
        %601 = vmatpush1.bf16.msra.mxu0 %v510
        %602 = vmatprep.subr.bf16.mxu0 0
        %603 = vmatpush1.bf16.msra.mxu0 %v511
        %604 = vmatprep.subr.bf16.mxu0 0
        %605 = vmatpush1.bf16.msra.mxu0 %v512
        %606 = vmatprep.subr.bf16.mxu0 0
        %607 = vmatpush1.bf16.msra.mxu0 %v513
        %608 = vmatprep.subr.bf16.mxu0 0
        %609 = vmatpush1.bf16.msra.mxu0 %v514
        %610 = vmatprep.subr.bf16.mxu0 0
        %611 = vmatpush1.bf16.msra.mxu0 %v515
        %612 = vmatprep.subr.bf16.mxu0 0
        %613 = vmatpush1.bf16.msra.mxu0 0
        %614 = vmatprep.subr.bf16.mxu0 0
        %615 = vmatpush1.bf16.msra.mxu0 0
        %616 = vmatprep.subr.bf16.mxu0 0
        %617 = vmatpush1.bf16.msra.mxu0 0
        %618 = vmatprep.subr.bf16.mxu0 0
        %619 = vmatpush1.bf16.msra.mxu0 0
        %620 = vmatprep.mubr.bf16.mxu0 %v545
        %621 = vmatmul.mubr.bf16.gmra.mrb[0].mxu0 %v311
        %v622 = vpop.f32.mrb[0].mxu0
        %v623 = vadd.f32 %v582, %v622
        %v624 = vpop.f32.mrb[0].mxu0
        %v625 = vpop.f32.mrb[0].mxu0
        %v626 = vadd.f32 %v585, %v625
        %v627 = vpop.f32.mrb[0].mxu0
        %628 = vdwg.mxu0
        %629 = vst [vmem:[%s217] sm:$0xff] %v623
        %630 = vst [vmem:[%s217 + $0x8] sm:$0xff] %v626
        %p631 = scmp.lt.s32.totalorder %s18, 1
        %s632 = scalar_select %p631, %s18, 1
        %s633 = smul.addr %s632, 2
        %s634 = smul.addr %s633, 8
        %s635 = scalar_lea.vmem %s3, %s634
        // Predicated region
        $region45: #{vocos_decoder_forward.3} parent=31 // pred_check
          %p636 = pneg %p104
        $region46: #{vocos_decoder_forward.3} parent=31 // pred_check_branch
          %638 = sbr.rel (%p636) target = $region48
        $region47: #{vocos_decoder_forward.3} parent=31 // pred_region
          _
        $region48: #{vocos_decoder_forward.3} parent=31 // pred_fallthru
          _
      $region32: #{vocos_decoder_forward.3} parent=5 // pred_fallthru
        _
      %p639 = scmp.le.s32.totalorder 2, %s13
      // Predicated region
      $region49: #{vocos_decoder_forward.3} parent=5 // pred_check
        %p640 = pneg %p639
      $region50: #{vocos_decoder_forward.3} parent=5 // pred_check_branch
        %642 = sbr.rel (%p640) target = $region52
      $region51: #{vocos_decoder_forward.3} parent=5 // pred_region
        %s643 = ssub.s32 %s13, 2
        // Predicated region
        $region53: #{vocos_decoder_forward.3} parent=51 // pred_check
          %p644 = pneg %p110
        $region54: #{vocos_decoder_forward.3} parent=51 // pred_check_branch
          %646 = sbr.rel (%p644) target = $region56
        $region55: #{vocos_decoder_forward.3} parent=51 // pred_region
          %p647 = scmp.lt.s32.totalorder %s19, 1
          %s648 = scalar_select %p647, %s19, 1
          %s649 = smul.addr %s648, 2
          %s650 = smul.addr %s649, 8
          %s651 = scalar_lea.vmem %s3, %s650
        $region56: #{vocos_decoder_forward.3} parent=51 // pred_fallthru
          _
      $region52: #{vocos_decoder_forward.3} parent=5 // pred_fallthru
        _
    $region6: #{vocos_decoder_forward.3} parent=1 // loop_footer
      %s17 = sadd.s32 1, %s13
    $region7: #{vocos_decoder_forward.3} parent=1 // loop_footer_branch
      %12 = sbr.rel target = $region3
    $region8: #{vocos_decoder_forward.3} parent=1 // loop_exit
      _
    %652 = vsyncpa [#allocation3], 1
    %s653 = scalar_lea.sflag [#allocation3], 1
    %654 = vsyncpa %s653, 1
    %655 = vsyncpa [#allocation5], 1

// kernel: vocos_decoder_forward.5
$region0: #{vocos_decoder_forward.5}
  #allocation0 [shape = 'u32[]', space=smem, size = 0x4, offset = 0x4, fixed_abs, tag = 'smem constant byte address 0x4 - core index']
  #allocation1 [shape = 'u32[144,128]{1,0:T(1,128)}', space=vmem, size = 0x12000, scoped, tag = 'internal scratch']
  %s0 = inlined_call_operand.vmem [shape: f32[2,17,128], index: 0, kind: input, shape index: {}]
  %s1 = inlined_call_operand.vmem [shape: f32[1,128], index: 1, kind: input, shape index: {}]
  %s2 = inlined_call_operand.vmem [shape: f32[1,128], index: 2, kind: input, shape index: {}]
  %s3 = inlined_call_operand.vmem [shape: bf16[128,128], index: 3, kind: input, shape index: {}]
  %s4 = inlined_call_operand.vmem [shape: f32[1,128], index: 4, kind: input, shape index: {}]
  %s5 = inlined_call_operand.vmem [shape: f32[2,17,128], index: 5, kind: output, shape index: {}]
  %s6 = sld [smem:[#allocation0]]
  $region53: #{vocos_decoder_forward.5} parent=0
    _
  %s8 = ssub.s32 1, %s6
  %s9 = scalar_select 0, %s8, %s6
  loop: start=0, step=1, limit=4
  $region2: #{vocos_decoder_forward.5} parent=0 // loop_pre_header
    _
  $region3: #{vocos_decoder_forward.5} parent=0 // loop_header
    %s11 = sphi 0, %s15
    %p12 = scmp.ge.s32.totalorder %s11, 4
    %s21 = sphi 0, %s23
    %s24 = sphi 0, %s21
    %s25 = sphi 0, %s24
    %s41 = sphi 0, %s25
    %s45 = sphi 0, %s45
    %s47 = sphi 0, %s45
    %s48 = sphi 0, %s47
    %s62 = sphi 0, %s48
    %s66 = sphi 0, %s66
    %s68 = sphi 0, %s66
    %s69 = sphi 0, %s68
    %s83 = sphi 0, %s69
    %s87 = sphi 0, %s87
    %s89 = sphi 0, %s87
    %s90 = sphi 0, %s89
    %s104 = sphi 0, %s90
    %s108 = sphi 0, %s108
    %s110 = sphi 0, %s108
    %s111 = sphi 0, %s110
    %s125 = sphi 0, %s111
    %s131 = sphi 0, %s133
    %s134 = sphi 0, %s131
    %s135 = sphi 0, %s134
    %s151 = sphi 0, %s135
  $region4: #{vocos_decoder_forward.5} parent=0 // loop_header_branch
    %14 = sbr.rel (%p12) target = $region8
  $region5: #{vocos_decoder_forward.5} parent=0 // loop_body
    %s16 = ssub.s32 %s11, 1
    %s17 = ssub.s32 %s11, 2
    %s18 = sadd.s32 %s11, 1
    %s19 = ssub.s32 %s11, %s18
    %p20 = scmp.eq.s32.totalorder %s19, 0
    %s22 = sadd.s32 %s21, 1
    %s23 = scalar_select %p20, %s21, %s22
    %p26 = pneg %p20
    %p27 = scmp.eq.s32.totalorder %s11, 1
    %p28 = por %p26, %p27
    %p29 = scmp.ne.s32.totalorder %s21, %s24
    %p30 = scmp.eq.s32.totalorder %s11, 0
    %p31 = por %p29, %p30
    %p32 = scmp.ne.s32.totalorder %s21, %s24
    %p33 = scmp.eq.s32.totalorder %s16, 1
    %p34 = por %p32, %p33
    %p35 = scmp.ne.s32.totalorder %s24, %s25
    %p36 = scmp.eq.s32.totalorder %s16, 0
    %p37 = por %p35, %p36
    %p38 = scmp.ne.s32.totalorder %s24, %s25
    %p39 = scmp.eq.s32.totalorder %s17, 1
    %p40 = por %p38, %p39
    %p42 = scmp.ne.s32.totalorder %s25, %s41
    %p43 = scmp.eq.s32.totalorder %s17, 0
    %p44 = por %p42, %p43
    %s46 = sadd.s32 %s45, 1
    %p49 = scmp.eq.s32.totalorder %s11, 1
    %p50 = scmp.ne.s32.totalorder %s45, %s47
    %p51 = scmp.eq.s32.totalorder %s11, 0
    %p52 = por %p50, %p51
    %p53 = scmp.ne.s32.totalorder %s45, %s47
    %p54 = scmp.eq.s32.totalorder %s16, 1
    %p55 = por %p53, %p54
    %p56 = scmp.ne.s32.totalorder %s47, %s48
    %p57 = scmp.eq.s32.totalorder %s16, 0
    %p58 = por %p56, %p57
    %p59 = scmp.ne.s32.totalorder %s47, %s48
    %p60 = scmp.eq.s32.totalorder %s17, 1
    %p61 = por %p59, %p60
    %p63 = scmp.ne.s32.totalorder %s48, %s62
    %p64 = scmp.eq.s32.totalorder %s17, 0
    %p65 = por %p63, %p64
    %s67 = sadd.s32 %s66, 1
    %p70 = scmp.eq.s32.totalorder %s11, 1
    %p71 = scmp.ne.s32.totalorder %s66, %s68
    %p72 = scmp.eq.s32.totalorder %s11, 0
    %p73 = por %p71, %p72
    %p74 = scmp.ne.s32.totalorder %s66, %s68
    %p75 = scmp.eq.s32.totalorder %s16, 1
    %p76 = por %p74, %p75
    %p77 = scmp.ne.s32.totalorder %s68, %s69
    %p78 = scmp.eq.s32.totalorder %s16, 0
    %p79 = por %p77, %p78
    %p80 = scmp.ne.s32.totalorder %s68, %s69
    %p81 = scmp.eq.s32.totalorder %s17, 1
    %p82 = por %p80, %p81
    %p84 = scmp.ne.s32.totalorder %s69, %s83
    %p85 = scmp.eq.s32.totalorder %s17, 0
    %p86 = por %p84, %p85
    %s88 = sadd.s32 %s87, 1
    %p91 = scmp.eq.s32.totalorder %s11, 1
    %p92 = scmp.ne.s32.totalorder %s87, %s89
    %p93 = scmp.eq.s32.totalorder %s11, 0
    %p94 = por %p92, %p93
    %p95 = scmp.ne.s32.totalorder %s87, %s89
    %p96 = scmp.eq.s32.totalorder %s16, 1
    %p97 = por %p95, %p96
    %p98 = scmp.ne.s32.totalorder %s89, %s90
    %p99 = scmp.eq.s32.totalorder %s16, 0
    %p100 = por %p98, %p99
    %p101 = scmp.ne.s32.totalorder %s89, %s90
    %p102 = scmp.eq.s32.totalorder %s17, 1
    %p103 = por %p101, %p102
    %p105 = scmp.ne.s32.totalorder %s90, %s104
    %p106 = scmp.eq.s32.totalorder %s17, 0
    %p107 = por %p105, %p106
    %s109 = sadd.s32 %s108, 1
    %p112 = scmp.eq.s32.totalorder %s11, 1
    %p113 = scmp.ne.s32.totalorder %s108, %s110
    %p114 = scmp.eq.s32.totalorder %s11, 0
    %p115 = por %p113, %p114
    %p116 = scmp.ne.s32.totalorder %s108, %s110
    %p117 = scmp.eq.s32.totalorder %s16, 1
    %p118 = por %p116, %p117
    %p119 = scmp.ne.s32.totalorder %s110, %s111
    %p120 = scmp.eq.s32.totalorder %s16, 0
    %p121 = por %p119, %p120
    %p122 = scmp.ne.s32.totalorder %s110, %s111
    %p123 = scmp.eq.s32.totalorder %s17, 1
    %p124 = por %p122, %p123
    %p126 = scmp.ne.s32.totalorder %s111, %s125
    %p127 = scmp.eq.s32.totalorder %s17, 0
    %p128 = por %p126, %p127
    %s129 = ssub.s32 %s11, %s18
    %p130 = scmp.eq.s32.totalorder %s129, 0
    %s132 = sadd.s32 %s131, 1
    %s133 = scalar_select %p130, %s131, %s132
    %p136 = pneg %p130
    %p137 = scmp.eq.s32.totalorder %s11, 1
    %p138 = por %p136, %p137
    %p139 = scmp.ne.s32.totalorder %s131, %s134
    %p140 = scmp.eq.s32.totalorder %s11, 0
    %p141 = por %p139, %p140
    %p142 = scmp.ne.s32.totalorder %s131, %s134
    %p143 = scmp.eq.s32.totalorder %s16, 1
    %p144 = por %p142, %p143
    %p145 = scmp.ne.s32.totalorder %s134, %s135
    %p146 = scmp.eq.s32.totalorder %s16, 0
    %p147 = por %p145, %p146
    %p148 = scmp.ne.s32.totalorder %s134, %s135
    %p149 = scmp.eq.s32.totalorder %s17, 1
    %p150 = por %p148, %p149
    %p152 = scmp.ne.s32.totalorder %s135, %s151
    %p153 = scmp.eq.s32.totalorder %s17, 0
    %p154 = por %p152, %p153
    %p155 = scmp.le.s32.totalorder 1, %s11
    %p156 = scmp.lt.s32.totalorder %s11, 3
    %p157 = pnand %p155, %p156
    %p158 = pneg %p157
    // Predicated region
    $region9: #{vocos_decoder_forward.5} parent=5 // pred_check
      _
    $region10: #{vocos_decoder_forward.5} parent=5 // pred_check_branch
      %160 = sbr.rel (%p157) target = $region12
    $region11: #{vocos_decoder_forward.5} parent=5 // pred_region
      %s161 = ssub.s32 %s11, 1
      // Predicated region
      $region13: #{vocos_decoder_forward.5} parent=11 // pred_check
        %p162 = pneg %p58
      $region14: #{vocos_decoder_forward.5} parent=11 // pred_check_branch
        %164 = sbr.rel (%p162) target = $region16
      $region15: #{vocos_decoder_forward.5} parent=11 // pred_region
        _
      $region16: #{vocos_decoder_forward.5} parent=11 // pred_fallthru
        _
      // Predicated region
      $region17: #{vocos_decoder_forward.5} parent=11 // pred_check
        %p165 = pneg %p79
      $region18: #{vocos_decoder_forward.5} parent=11 // pred_check_branch
        %167 = sbr.rel (%p165) target = $region20
      $region19: #{vocos_decoder_forward.5} parent=11 // pred_region
        _
      $region20: #{vocos_decoder_forward.5} parent=11 // pred_fallthru
        _
      // Predicated region
      $region21: #{vocos_decoder_forward.5} parent=11 // pred_check
        %p168 = pneg %p100
      $region22: #{vocos_decoder_forward.5} parent=11 // pred_check_branch
        %170 = sbr.rel (%p168) target = $region24
      $region23: #{vocos_decoder_forward.5} parent=11 // pred_region
        _
      $region24: #{vocos_decoder_forward.5} parent=11 // pred_fallthru
        _
      // Predicated region
      $region25: #{vocos_decoder_forward.5} parent=11 // pred_check
        %p171 = pneg %p121
      $region26: #{vocos_decoder_forward.5} parent=11 // pred_check_branch
        %173 = sbr.rel (%p171) target = $region28
      $region27: #{vocos_decoder_forward.5} parent=11 // pred_region
        _
      $region28: #{vocos_decoder_forward.5} parent=11 // pred_fallthru
        _
    $region12: #{vocos_decoder_forward.5} parent=5 // pred_fallthru
      _
    %p174 = scmp.lt.s32.totalorder %s11, 2
    // Predicated region
    $region29: #{vocos_decoder_forward.5} parent=5 // pred_check
      %p175 = pneg %p174
    $region30: #{vocos_decoder_forward.5} parent=5 // pred_check_branch
      %177 = sbr.rel (%p175) target = $region32
    $region31: #{vocos_decoder_forward.5} parent=5 // pred_region
      // Predicated region
      $region33: #{vocos_decoder_forward.5} parent=31 // pred_check
        %p178 = pneg %p31
      $region34: #{vocos_decoder_forward.5} parent=31 // pred_check_branch
        %180 = sbr.rel (%p178) target = $region36
      $region35: #{vocos_decoder_forward.5} parent=31 // pred_region
        %p181 = scmp.lt.s32.totalorder %s11, 1
        %s182 = scalar_select %p181, %s11, 1
        %s183 = smul.addr %s182, 3
        %s184 = smul.addr %s183, 8
        %s185 = scalar_lea.vmem %s0, %s184
      $region36: #{vocos_decoder_forward.5} parent=31 // pred_fallthru
        _
    $region32: #{vocos_decoder_forward.5} parent=5 // pred_fallthru
      _
    %p186 = scmp.le.s32.totalorder 1, %s11
    %p187 = scmp.lt.s32.totalorder %s11, 3
    %p188 = pnand %p186, %p187
    %p189 = pneg %p188
    // Predicated region
    $region37: #{vocos_decoder_forward.5} parent=5 // pred_check
      _
    $region38: #{vocos_decoder_forward.5} parent=5 // pred_check_branch
      %191 = sbr.rel (%p188) target = $region40
    $region39: #{vocos_decoder_forward.5} parent=5 // pred_region
      %s192 = ssub.s32 %s11, 1
      %p193 = scmp.lt.s32.totalorder %s16, 1
      %s194 = scalar_select %p193, %s16, 1
      %s195 = smul.addr %s194, 3
      %s196 = smul.addr %s195, 8
      %s197 = scalar_lea.vmem %s0, %s196
      %p198 = pneg %p37
      %p199 = pneg %p34
      %p200 = pneg %p58
      %p201 = pneg %p55
      %p202 = pneg %p79
      %p203 = pneg %p76
      %p204 = pneg %p100
      %p205 = pneg %p97
      %p206 = pneg %p121
      %p207 = pneg %p118
      %p208 = pneg %p147
      %p209 = pneg %p144
      %p210 = scmp.lt.s32.totalorder %s16, 1
      %s211 = scalar_select %p210, %s16, 1
      %s212 = smul.addr %s211, 3
      %s213 = smul.addr %s212, 8
      %s214 = scalar_lea.vmem %s5, %s213
      %p215 = scmp.lt.s32.totalorder %s16, 1
      %s216 = scalar_select %p215, %s16, 1
      %s217 = smul.addr %s216, 3
      %s218 = smul.addr %s217, 8
      %s219 = scalar_lea.vmem %s0, %s218
      %p220 = scmp.lt.s32.totalorder %s16, 1
      %s221 = scalar_select %p220, %s16, 1
      %s222 = smul.addr %s221, 3
      %s223 = smul.addr %s222, 8
      %s224 = scalar_lea.vmem %s5, %s223
      %v226 = vld [vmem:[%s219] sm:$0xff]
      %v227 = vld [vmem:[%s219 + $0x8] sm:$0xff]
      %v228 = vld [vmem:[%s219 + $0x10] sm:$0x1]
      %v229 = vld [vmem:[%s1] sm:$0x1]
      %v230 = vld [vmem:[%s2] sm:$0x1]
      %231 = vadd.xlane.f32.xlu0 %v226
      %v232 = vpop.xlane.xlu0 %231
      %233 = vadd.xlane.f32.xlu0 %v227
      %v234 = vpop.xlane.xlu0 %233
      %vm235 = vcmask 1040384
      %v236 = vsel %vm235, %v228, 0.0
      %237 = vadd.xlane.f32.xlu0 %v236
      %v238 = vpop.xlane.xlu0 %237
      %v239 = vrcp.pop 128.0
      %v240 = vmul.f32 %v232, %v239
      %v241 = vmul.f32 %v234, %v239
      %v242 = vmul.f32 %v238, %v239
      %v243 = vsub.f32 %v226, %v240
      %v244 = vsub.f32 %v227, %v241
      %v245 = vsub.f32 %v228, %v242
      %v246 = vmul.f32 %v243, %v243
      %v247 = vmul.f32 %v244, %v244
      %v248 = vmul.f32 %v245, %v245
      %249 = vadd.xlane.f32.xlu0 %v246
      %v250 = vpop.xlane.xlu0 %249
      %251 = vadd.xlane.f32.xlu0 %v247
      %v252 = vpop.xlane.xlu0 %251
      %v253 = vsel %vm235, %v248, 0.0
      %254 = vadd.xlane.f32.xlu0 %v253
      %v255 = vpop.xlane.xlu0 %254
      %v256 = vmul.f32 %v250, %v239
      %v257 = vmul.f32 %v252, %v239
      %v258 = vmul.f32 %v255, %v239
      %v259 = vadd.f32 %v256, 1e-06
      %v260 = vadd.f32 %v257, 1e-06
      %v261 = vadd.f32 %v258, 1e-06
      %v262 = vrsqrt.pop %v259
      %v263 = vrsqrt.pop %v260
      %v264 = vrsqrt.pop %v261
      %v265 = vmul.f32 %v243, %v262
      %v266 = vmul.f32 %v244, %v263
      %v267 = vmul.f32 %v245, %v264
      %v269 = vlaneseq
      %v270 = vshrl.u32 %v269, 7
      %v271 = vsub.s32 0, %v270
      %v272 = vrot.slane %v229, %v271
      %v274 = vmul.f32 %v265, %v272
      %v275 = vmul.f32 %v266, %v272
      %v276 = vmul.f32 %v267, %v272
      %v278 = vlaneseq
      %v279 = vshrl.u32 %v278, 7
      %v280 = vsub.s32 0, %v279
      %v281 = vrot.slane %v230, %v280
      %v283 = vadd.f32 %v274, %v281
      %v284 = vadd.f32 %v275, %v281
      %v285 = vadd.f32 %v276, %v281
      %v286 = vpack.c.bf16 %v284, %v283
      %v287 = vpack.c.bf16 %v285, %v285
      %v288 = vld [vmem:[%s3] sm:$0xf]
      %v289 = vld [vmem:[%s3 + $0x4] sm:$0xf]
      %v290 = vld [vmem:[%s3 + $0x8] sm:$0xf]
      %v291 = vld [vmem:[%s3 + $0xc] sm:$0xf]
      %v292 = vld [vmem:[%s3 + $0x10] sm:$0xf]
      %v293 = vld [vmem:[%s3 + $0x14] sm:$0xf]
      %v294 = vld [vmem:[%s3 + $0x18] sm:$0xf]
      %v295 = vld [vmem:[%s3 + $0x1c] sm:$0xf]
      %v296 = vld [vmem:[%s3 + $0x20] sm:$0xf]
      %v297 = vld [vmem:[%s3 + $0x24] sm:$0xf]
      %v298 = vld [vmem:[%s3 + $0x28] sm:$0xf]
      %v299 = vld [vmem:[%s3 + $0x2c] sm:$0xf]
      %v300 = vld [vmem:[%s3 + $0x30] sm:$0xf]
      %v301 = vld [vmem:[%s3 + $0x34] sm:$0xf]
      %v302 = vld [vmem:[%s3 + $0x38] sm:$0xf]
      %v303 = vld [vmem:[%s3 + $0x3c] sm:$0xf]
      %v304 = vld [vmem:[%s4] sm:$0x1]
      %v306 = vlaneseq
      %v307 = vshrl.u32 %v306, 7
      %v308 = vsub.s32 0, %v307
      %v309 = vrot.slane %v304, %v308
      %v327 = vunpack.c.l.b16 %v288
      %v328 = vunpack.c.l.b16 %v289
      %v329 = vunpack.c.l.b16 %v290
      %v330 = vunpack.c.l.b16 %v291
      %v331 = vunpack.c.l.b16 %v292
      %v332 = vunpack.c.l.b16 %v293
      %v333 = vunpack.c.l.b16 %v294
      %v334 = vunpack.c.l.b16 %v295
      %v335 = vunpack.c.l.b16 %v296
      %v336 = vunpack.c.l.b16 %v297
      %v337 = vunpack.c.l.b16 %v298
      %v338 = vunpack.c.l.b16 %v299
      %v339 = vunpack.c.l.b16 %v300
      %v340 = vunpack.c.l.b16 %v301
      %v341 = vunpack.c.l.b16 %v302
      %v342 = vunpack.c.l.b16 %v303
      %v343 = vpack.c.b16 %v328, %v327
      %v344 = vpack.c.b16 %v330, %v329
      %v345 = vpack.c.b16 %v332, %v331
      %v346 = vpack.c.b16 %v334, %v333
      %v347 = vpack.c.b16 %v336, %v335
      %v348 = vpack.c.b16 %v338, %v337
      %v349 = vpack.c.b16 %v340, %v339
      %v350 = vpack.c.b16 %v342, %v341
      %359 = vmatprep.subr.bf16.mxu0 0
      %360 = vmatpush1.bf16.msra.mxu0 %v343
      %361 = vmatprep.subr.bf16.mxu0 0
      %362 = vmatpush1.bf16.msra.mxu0 %v344
      %363 = vmatprep.subr.bf16.mxu0 0
      %364 = vmatpush1.bf16.msra.mxu0 %v345
      %365 = vmatprep.subr.bf16.mxu0 0
      %366 = vmatpush1.bf16.msra.mxu0 %v346
      %367 = vmatprep.subr.bf16.mxu0 0
      %368 = vmatpush1.bf16.msra.mxu0 %v347
      %369 = vmatprep.subr.bf16.mxu0 0
      %370 = vmatpush1.bf16.msra.mxu0 %v348
      %371 = vmatprep.subr.bf16.mxu0 0
      %372 = vmatpush1.bf16.msra.mxu0 %v349
      %373 = vmatprep.subr.bf16.mxu0 0
      %374 = vmatpush1.bf16.msra.mxu0 %v350
      %375 = vmatprep.subr.bf16.mxu0 0
      %376 = vmatpush1.bf16.msra.mxu0 0
      %377 = vmatprep.subr.bf16.mxu0 0
      %378 = vmatpush1.bf16.msra.mxu0 0
      %379 = vmatprep.subr.bf16.mxu0 0
      %380 = vmatpush1.bf16.msra.mxu0 0
      %381 = vmatprep.subr.bf16.mxu0 0
      %382 = vmatpush1.bf16.msra.mxu0 0
      %383 = vmatprep.subr.bf16.mxu0 0
      %384 = vmatpush1.bf16.msra.mxu0 0
      %385 = vmatprep.subr.bf16.mxu0 0
      %386 = vmatpush1.bf16.msra.mxu0 0
      %387 = vmatprep.subr.bf16.mxu0 0
      %388 = vmatpush1.bf16.msra.mxu0 0
      %389 = vmatprep.subr.bf16.mxu0 0
      %390 = vmatpush1.bf16.msra.mxu0 0
      %391 = vmatprep.mubr.bf16.mxu0 0
      %392 = vmatmul.mubr.bf16.gmra.mrb[0].mxu0 %v286
      %v393 = vpop.f32.mrb[0].mxu0
      %v394 = vadd.f32 %v309, %v393
      %v395 = vpop.f32.mrb[0].mxu0
      %v396 = vpop.f32.mrb[0].mxu0
      %v397 = vadd.f32 %v309, %v396
      %v398 = vpop.f32.mrb[0].mxu0
      %399 = vmatprep.mubr.bf16.mxu0 0
      %400 = vmatmul.mubr.bf16.gmra.mrb[0].mxu0 %v287
      %v401 = vpop.f32.mrb[0].mxu0
      %v402 = vadd.f32 %v309, %v401
      %v403 = vpop.f32.mrb[0].mxu0
      %v404 = vpop.f32.mrb[0].mxu0
      %v405 = vpop.f32.mrb[0].mxu0
      %406 = vdwg.mxu0
      %v407 = vlaneseq
      %v408 = vand.u32 %v407, 127
      %v409 = vmul.f32 %v394, 1.442695
      %v410 = vpow.pop %v409
      %v411 = vmul.f32 %v397, 1.442695
      %v412 = vpow.pop %v411
      %v413 = vmul.f32 %v402, 1.442695
      %v414 = vpow.pop %v413
      %v415 = vmin.f32 %v410, 100.0
      %v416 = vmin.f32 %v412, 100.0
      %v417 = vmin.f32 %v414, 100.0
      %v418 = vand.u32 2147483647, %v394
      %vm419 = vcmp.le.f32.partialorder %v418, 0.7853982
      %vm420 = vcmp.lt.s32.totalorder %v394, 0
      %v421 = vand.u32 %v394, 2139095040
      %v422 = vshrl.u32 %v421, 23
      %v423 = vsub.s32 %v422, 127
      %v424 = vand.u32 2147483647, %v394
      %v425 = vand.u32 %v424, 8388607
      %v426 = vor.u32 %v425, 8388608
      %v427 = vsub.s32 0, %v426
      %v428 = vadd.s32 %v423, 1
      %vm429 = vcmp.gt.s32.totalorder %v428, 0
      %v430 = vsel %vm429, %v428, 0
      %v431 = vshrl.u32 %v430, 5
      %v432 = vand.u32 %v430, 31
      %v433 = vsub.s32 32, %v432
      %v434 = vshrl.u32 683565275, %v433
      %v435 = vshll.u32 683565275, %v432
      %v436 = vshrl.u32 2475754826, %v433
      %v437 = vor.u32 %v435, %v436
      %v438 = vshll.u32 2475754826, %v432
      %v439 = vshrl.u32 2131351028, %v433
      %v440 = vor.u32 %v438, %v439
      %v441 = vshll.u32 2131351028, %v432
      %v442 = vshrl.u32 2102212464, %v433
      %v443 = vor.u32 %v441, %v442
      %v444 = vshll.u32 2102212464, %v432
      %v445 = vshrl.u32 920167782, %v433
      %v446 = vor.u32 %v444, %v445
      %v447 = vshll.u32 920167782, %v432
      %v448 = vshrl.u32 1326507024, %v433
      %v449 = vor.u32 %v447, %v448
      %vm450 = vcmp.lt.s32.totalorder %v431, 1
      %vm451 = vcmp.lt.s32.totalorder %v431, 2
      %vm452 = vcmp.lt.s32.totalorder %v431, 3
      %vm453 = vcmp.lt.s32.totalorder %v431, 4
      %v454 = vsel %vm450, %v434, %v437
      %v455 = vsel %vm453, %v443, 2102212464
      %v456 = vsel %vm452, %v440, %v455
      %v457 = vsel %vm451, %v454, %v456
      %v458 = vsel %vm450, %v437, %v440
      %v459 = vsel %vm453, %v446, 920167782
      %v460 = vsel %vm452, %v443, %v459
      %v461 = vsel %vm451, %v458, %v460
      %v462 = vsel %vm450, %v440, %v443
      %v463 = vsel %vm453, %v449, 1326507024
      %v464 = vsel %vm452, %v446, %v463
      %v465 = vsel %vm451, %v462, %v464
      %v466 = vshll.u32 %v426, 8
      %v467 = vmul.u32.u64.compose %v466, %v465
      %v468 = vextract.low.u32 %v467
      %v469 = vextract.high.u32 %v467
      %v470 = vmul.u32.u64.compose %v466, %v461
      %v471 = vextract.low.u32 %v470
      %v472 = vextract.high.u32 %v470
      %v473 = vmul.u32 %v466, %v457
      %v474 = vadd.s32 %v469, %v471
      %vm475 = vc.u32 %v469, %v471
      %v476 = vadd.s32 %v472, 1
      %v477 = vsel %vm475, %v476, %v472
      %v478 = vadd.s32 %v473, %v477
      %v479 = vadd.s32 %v478, 536870912
      %v480 = vshrl.u32 %v479, 30
      %v481 = vshll.u32 %v480, 30
      %v482 = vsub.s32 %v478, %v481
      %vm483 = vcmp.lt.s32.totalorder %v482, 0
      %v484 = vsub.s32 0, %v482
      %v485 = vsel %vm483, %v484, %v482
      %v486 = vclz %v485
      %v487 = vsub.s32 %v486, 2
      %vm488 = vcmp.gt.s32.totalorder 0, %v487
      %v489 = vsel %vm488, 0, %v487
      %v490 = vsub.s32 32, %v489
      %v491 = vshll.u32 %v482, %v489
      %v492 = vshrl.u32 %v474, %v490
      %v493 = vor.u32 %v491, %v492
      %v494 = vsub.s32 4294967266, %v489
      %v495 = vadd.s32 %v494, 127
      %v496 = vshll.u32 %v495, 23
      %v497 = vor.u32 4788187, %v496
      %v498 = vand.u32 2147483647, %v497
      %v500 = vcvt.s32.f32 %v493
      %v501 = vmul.f32 %v500, %v498
      %v502 = vxor.u32 %v501, 2147483648
      %v503 = vsel %vm420, %v502, %v501
      %v504 = vsub.s32 4, %v480
      %v505 = vsel %vm420, %v504, %v480
      %v506 = vsel %vm419, %v394, %v503
      %v507 = vsel %vm419, 0, %v505
      %v508 = vcosq.f32.pop %v506
      %v509 = vsinq.f32.pop %v506
      %vm510 = vweird.f32 %v394
      %v511 = vadd.s32 %v507, 3
      %v512 = vand.u32 %v511, 3
      %vm513 = vcmp.lt.s32.totalorder %v512, 2
      %vm514 = vcmp.eq.s32.totalorder %v512, 0
      %v515 = vxor.u32 %v509, 2147483648
      %v516 = vsel %vm514, %v508, %v515
      %vm517 = vcmp.eq.s32.totalorder %v512, 2
      %v518 = vxor.u32 %v508, 2147483648
      %v519 = vsel %vm517, %v518, %v509
      %v520 = vsel %vm513, %v516, %v519
      %v521 = vsel %vm510, nan, %v520
      %v522 = vand.u32 2147483647, %v397
      %vm523 = vcmp.le.f32.partialorder %v522, 0.7853982
      %vm524 = vcmp.lt.s32.totalorder %v397, 0
      %v525 = vand.u32 %v397, 2139095040
      %v526 = vshrl.u32 %v525, 23
      %v527 = vsub.s32 %v526, 127
      %v528 = vand.u32 2147483647, %v397
      %v529 = vand.u32 %v528, 8388607
      %v530 = vor.u32 %v529, 8388608
      %v531 = vsub.s32 0, %v530
      %v532 = vadd.s32 %v527, 1
      %vm533 = vcmp.gt.s32.totalorder %v532, 0
      %v534 = vsel %vm533, %v532, 0
      %v535 = vshrl.u32 %v534, 5
      %v536 = vand.u32 %v534, 31
      %v537 = vsub.s32 32, %v536
      %v538 = vshrl.u32 683565275, %v537
      %v539 = vshll.u32 683565275, %v536
      %v540 = vshrl.u32 2475754826, %v537
      %v541 = vor.u32 %v539, %v540
      %v542 = vshll.u32 2475754826, %v536
      %v543 = vshrl.u32 2131351028, %v537
      %v544 = vor.u32 %v542, %v543
      %v545 = vshll.u32 2131351028, %v536
      %v546 = vshrl.u32 2102212464, %v537
      %v547 = vor.u32 %v545, %v546
      %v548 = vshll.u32 2102212464, %v536
      %v549 = vshrl.u32 920167782, %v537
      %v550 = vor.u32 %v548, %v549
      %v551 = vshll.u32 920167782, %v536
      %v552 = vshrl.u32 1326507024, %v537
      %v553 = vor.u32 %v551, %v552
      %vm554 = vcmp.lt.s32.totalorder %v535, 1
      %vm555 = vcmp.lt.s32.totalorder %v535, 2
      %vm556 = vcmp.lt.s32.totalorder %v535, 3
      %vm557 = vcmp.lt.s32.totalorder %v535, 4
      %v558 = vsel %vm554, %v538, %v541
      %v559 = vsel %vm557, %v547, 2102212464
      %v560 = vsel %vm556, %v544, %v559
      %v561 = vsel %vm555, %v558, %v560
      %v562 = vsel %vm554, %v541, %v544
      %v563 = vsel %vm557, %v550, 920167782
      %v564 = vsel %vm556, %v547, %v563
      %v565 = vsel %vm555, %v562, %v564
      %v566 = vsel %vm554, %v544, %v547
      %v567 = vsel %vm557, %v553, 1326507024
      %v568 = vsel %vm556, %v550, %v567
      %v569 = vsel %vm555, %v566, %v568
      %v570 = vshll.u32 %v530, 8
      %v571 = vmul.u32.u64.compose %v570, %v569
      %v572 = vextract.low.u32 %v571
      %v573 = vextract.high.u32 %v571
      %v574 = vmul.u32.u64.compose %v570, %v565
      %v575 = vextract.low.u32 %v574
      %v576 = vextract.high.u32 %v574
      %v577 = vmul.u32 %v570, %v561
      %v578 = vadd.s32 %v573, %v575
      %vm579 = vc.u32 %v573, %v575
      %v580 = vadd.s32 %v576, 1
      %v581 = vsel %vm579, %v580, %v576
      %v582 = vadd.s32 %v577, %v581
      %v583 = vadd.s32 %v582, 536870912
      %v584 = vshrl.u32 %v583, 30
      %v585 = vshll.u32 %v584, 30
      %v586 = vsub.s32 %v582, %v585
      %vm587 = vcmp.lt.s32.totalorder %v586, 0
      %v588 = vsub.s32 0, %v586
      %v589 = vsel %vm587, %v588, %v586
      %v590 = vclz %v589
      %v591 = vsub.s32 %v590, 2
      %vm592 = vcmp.gt.s32.totalorder 0, %v591
      %v593 = vsel %vm592, 0, %v591
      %v594 = vsub.s32 32, %v593
      %v595 = vshll.u32 %v586, %v593
      %v596 = vshrl.u32 %v578, %v594
      %v597 = vor.u32 %v595, %v596
      %v598 = vsub.s32 4294967266, %v593
      %v599 = vadd.s32 %v598, 127
      %v600 = vshll.u32 %v599, 23
      %v601 = vor.u32 4788187, %v600
      %v602 = vand.u32 2147483647, %v601
      %v604 = vcvt.s32.f32 %v597
      %v605 = vmul.f32 %v604, %v602
      %v606 = vxor.u32 %v605, 2147483648
      %v607 = vsel %vm524, %v606, %v605
      %v608 = vsub.s32 4, %v584
      %v609 = vsel %vm524, %v608, %v584
      %v610 = vsel %vm523, %v397, %v607
      %v611 = vsel %vm523, 0, %v609
      %v612 = vcosq.f32.pop %v610
      %v613 = vsinq.f32.pop %v610
      %vm614 = vweird.f32 %v397
      %v615 = vadd.s32 %v611, 3
      %v616 = vand.u32 %v615, 3
      %vm617 = vcmp.lt.s32.totalorder %v616, 2
      %vm618 = vcmp.eq.s32.totalorder %v616, 0
      %v619 = vxor.u32 %v613, 2147483648
      %v620 = vsel %vm618, %v612, %v619
      %vm621 = vcmp.eq.s32.totalorder %v616, 2
      %v622 = vxor.u32 %v612, 2147483648
      %v623 = vsel %vm621, %v622, %v613
      %v624 = vsel %vm617, %v620, %v623
      %v625 = vsel %vm614, nan, %v624
      %v626 = vand.u32 2147483647, %v402
      %vm627 = vcmp.le.f32.partialorder %v626, 0.7853982
      %vm628 = vcmp.lt.s32.totalorder %v402, 0
      %v629 = vand.u32 %v402, 2139095040
      %v630 = vshrl.u32 %v629, 23
      %v631 = vsub.s32 %v630, 127
      %v632 = vand.u32 2147483647, %v402
      %v633 = vand.u32 %v632, 8388607
      %v634 = vor.u32 %v633, 8388608
      %v635 = vsub.s32 0, %v634
      %v636 = vadd.s32 %v631, 1
      %vm637 = vcmp.gt.s32.totalorder %v636, 0
      %v638 = vsel %vm637, %v636, 0
      %v639 = vshrl.u32 %v638, 5
      %v640 = vand.u32 %v638, 31
      %v641 = vsub.s32 32, %v640
      %v642 = vshrl.u32 683565275, %v641
      %v643 = vshll.u32 683565275, %v640
      %v644 = vshrl.u32 2475754826, %v641
      %v645 = vor.u32 %v643, %v644
      %v646 = vshll.u32 2475754826, %v640
      %v647 = vshrl.u32 2131351028, %v641
      %v648 = vor.u32 %v646, %v647
      %v649 = vshll.u32 2131351028, %v640
      %v650 = vshrl.u32 2102212464, %v641
      %v651 = vor.u32 %v649, %v650
      %v652 = vshll.u32 2102212464, %v640
      %v653 = vshrl.u32 920167782, %v641
      %v654 = vor.u32 %v652, %v653
      %v655 = vshll.u32 920167782, %v640
      %v656 = vshrl.u32 1326507024, %v641
      %v657 = vor.u32 %v655, %v656
      %vm658 = vcmp.lt.s32.totalorder %v639, 1
      %vm659 = vcmp.lt.s32.totalorder %v639, 2
      %vm660 = vcmp.lt.s32.totalorder %v639, 3
      %vm661 = vcmp.lt.s32.totalorder %v639, 4
      %v662 = vsel %vm658, %v642, %v645
      %v663 = vsel %vm661, %v651, 2102212464
      %v664 = vsel %vm660, %v648, %v663
      %v665 = vsel %vm659, %v662, %v664
      %v666 = vsel %vm658, %v645, %v648
      %v667 = vsel %vm661, %v654, 920167782
      %v668 = vsel %vm660, %v651, %v667
      %v669 = vsel %vm659, %v666, %v668
      %v670 = vsel %vm658, %v648, %v651
      %v671 = vsel %vm661, %v657, 1326507024
      %v672 = vsel %vm660, %v654, %v671
      %v673 = vsel %vm659, %v670, %v672
      %v674 = vshll.u32 %v634, 8
      %v675 = vmul.u32.u64.compose %v674, %v673
      %v676 = vextract.low.u32 %v675
      %v677 = vextract.high.u32 %v675
      %v678 = vmul.u32.u64.compose %v674, %v669
      %v679 = vextract.low.u32 %v678
      %v680 = vextract.high.u32 %v678
      %v681 = vmul.u32 %v674, %v665
      %v682 = vadd.s32 %v677, %v679
      %vm683 = vc.u32 %v677, %v679
      %v684 = vadd.s32 %v680, 1
      %v685 = vsel %vm683, %v684, %v680
      %v686 = vadd.s32 %v681, %v685
      %v687 = vadd.s32 %v686, 536870912
      %v688 = vshrl.u32 %v687, 30
      %v689 = vshll.u32 %v688, 30
      %v690 = vsub.s32 %v686, %v689
      %vm691 = vcmp.lt.s32.totalorder %v690, 0
      %v692 = vsub.s32 0, %v690
      %v693 = vsel %vm691, %v692, %v690
      %v694 = vclz %v693
      %v695 = vsub.s32 %v694, 2
      %vm696 = vcmp.gt.s32.totalorder 0, %v695
      %v697 = vsel %vm696, 0, %v695
      %v698 = vsub.s32 32, %v697
      %v699 = vshll.u32 %v690, %v697
      %v700 = vshrl.u32 %v682, %v698
      %v701 = vor.u32 %v699, %v700
      %v702 = vsub.s32 4294967266, %v697
      %v703 = vadd.s32 %v702, 127
      %v704 = vshll.u32 %v703, 23
      %v705 = vor.u32 4788187, %v704
      %v706 = vand.u32 2147483647, %v705
      %v708 = vcvt.s32.f32 %v701
      %v709 = vmul.f32 %v708, %v706
      %v710 = vxor.u32 %v709, 2147483648
      %v711 = vsel %vm628, %v710, %v709
      %v712 = vsub.s32 4, %v688
      %v713 = vsel %vm628, %v712, %v688
      %v714 = vsel %vm627, %v402, %v711
      %v715 = vsel %vm627, 0, %v713
      %v716 = vcosq.f32.pop %v714
      %v717 = vsinq.f32.pop %v714
      %vm718 = vweird.f32 %v402
      %v719 = vadd.s32 %v715, 3
      %v720 = vand.u32 %v719, 3
      %vm721 = vcmp.lt.s32.totalorder %v720, 2
      %vm722 = vcmp.eq.s32.totalorder %v720, 0
      %v723 = vxor.u32 %v717, 2147483648
      %v724 = vsel %vm722, %v716, %v723
      %vm725 = vcmp.eq.s32.totalorder %v720, 2
      %v726 = vxor.u32 %v716, 2147483648
      %v727 = vsel %vm725, %v726, %v717
      %v728 = vsel %vm721, %v724, %v727
      %v729 = vsel %vm718, nan, %v728
      %v730 = vmul.f32 %v521, 3.1415927
      %v731 = vmul.f32 %v625, 3.1415927
      %v732 = vmul.f32 %v729, 3.1415927
      %vm733 = vcmp.lt.s32.totalorder %v408, 64
      %v734 = vsel %vm733, %v415, %v730
      %v735 = vsel %vm733, %v416, %v731
      %v736 = vsel %vm733, %v417, %v732
      %737 = vst [vmem:[%s224] sm:$0xff] %v734
      %738 = vst [vmem:[%s224 + $0x8] sm:$0xff] %v735
      %739 = vst [vmem:[%s224 + $0x10] sm:$0x1] %v736
      %p740 = scmp.lt.s32.totalorder %s16, 1
      %s741 = scalar_select %p740, %s16, 1
      %s742 = smul.addr %s741, 3
      %s743 = smul.addr %s742, 8
      %s744 = scalar_lea.vmem %s5, %s743
      // Predicated region
      $region41: #{vocos_decoder_forward.5} parent=39 // pred_check
        %p745 = pneg %p144
      $region42: #{vocos_decoder_forward.5} parent=39 // pred_check_branch
        %747 = sbr.rel (%p745) target = $region44
      $region43: #{vocos_decoder_forward.5} parent=39 // pred_region
        _
      $region44: #{vocos_decoder_forward.5} parent=39 // pred_fallthru
        _
    $region40: #{vocos_decoder_forward.5} parent=5 // pred_fallthru
      _
    %p748 = scmp.le.s32.totalorder 2, %s11
    // Predicated region
    $region45: #{vocos_decoder_forward.5} parent=5 // pred_check
      %p749 = pneg %p748
    $region46: #{vocos_decoder_forward.5} parent=5 // pred_check_branch
      %751 = sbr.rel (%p749) target = $region48
    $region47: #{vocos_decoder_forward.5} parent=5 // pred_region
      %s752 = ssub.s32 %s11, 2
      // Predicated region
      $region49: #{vocos_decoder_forward.5} parent=47 // pred_check
        %p753 = pneg %p150
      $region50: #{vocos_decoder_forward.5} parent=47 // pred_check_branch
        %755 = sbr.rel (%p753) target = $region52
      $region51: #{vocos_decoder_forward.5} parent=47 // pred_region
        %p756 = scmp.lt.s32.totalorder %s17, 1
        %s757 = scalar_select %p756, %s17, 1
        %s758 = smul.addr %s757, 3
        %s759 = smul.addr %s758, 8
        %s760 = scalar_lea.vmem %s5, %s759
      $region52: #{vocos_decoder_forward.5} parent=47 // pred_fallthru
        _
    $region48: #{vocos_decoder_forward.5} parent=5 // pred_fallthru
      _
  $region6: #{vocos_decoder_forward.5} parent=0 // loop_footer
    %s15 = sadd.s32 1, %s11
  $region7: #{vocos_decoder_forward.5} parent=0 // loop_footer_branch
    %10 = sbr.rel target = $region3
  $region8: #{vocos_decoder_forward.5} parent=0 // loop_exit
    _

// kernel: vocos_decoder_forward.4
$region0: #{vocos_decoder_forward.4}
  #allocation0 [shape = 'u32[]', space=smem, size = 0x4, offset = 0x4, fixed_abs, tag = 'smem constant byte address 0x4 - core index']
  #allocation1 [shape = 'u32[144,128]{1,0:T(1,128)}', space=vmem, size = 0x12000, scoped, tag = 'internal scratch']
  #allocation2 [shape = 'f32[16,128]{1,0:T(8,128)}', space=vmem, size = 0x2000, scoped, tag = 'scratch operand']
  %s0 = inlined_call_operand.vmem [shape: f32[2,16,128], index: 0, kind: input, shape index: {}]
  %s1 = inlined_call_operand.vmem [shape: f32[2,7,128], index: 1, kind: input, shape index: {}]
  %s2 = inlined_call_operand.vmem [shape: f32[2,1,128], index: 2, kind: input, shape index: {}]
  %s3 = inlined_call_operand.vmem [shape: f32[2,1,128], index: 3, kind: input, shape index: {}]
  %s4 = inlined_call_operand.vmem [shape: f32[2,1,128], index: 4, kind: input, shape index: {}]
  %s5 = inlined_call_operand.vmem [shape: bf16[2,128,256], index: 5, kind: input, shape index: {}]
  %s6 = inlined_call_operand.vmem [shape: f32[2,1,256], index: 6, kind: input, shape index: {}]
  %s7 = inlined_call_operand.hbm [shape: bf16[2,256,128], index: 7, kind: input, shape index: {}]
  %s8 = inlined_call_operand.vmem [shape: f32[2,1,128], index: 8, kind: input, shape index: {}]
  %s9 = inlined_call_operand.vmem [shape: f32[2,1,128], index: 9, kind: input, shape index: {}]
  %s10 = inlined_call_operand.vmem [shape: f32[2,16,128], index: 10, kind: output, shape index: {}]
  %s11 = sld [smem:[#allocation0]]
  $region85: #{vocos_decoder_forward.4} parent=0
    _
  %s13 = ssub.s32 1, %s11
  %s14 = scalar_select 0, %s13, %s11
  $region1: #{vocos_decoder_forward.4} parent=0
    #allocation3 [shape = 'u8[131072]{0}', space=vmem, size = 0x20000, scoped, tag = 'input window, operand 7']
    #allocation4 [shape = 's32[2]{0}', space=sflag, size = 0x8, scoped, tag = 'scoped memory for vocos_decoder_forward.4']
    %15 = vsyncpa [#allocation4], 0
    %s16 = scalar_lea.sflag [#allocation4], 1
    %17 = vsyncpa %s16, 0
    loop: start=0, step=1, limit=6
    $region2: #{vocos_decoder_forward.4} parent=1 // loop_pre_header
      _
    $region3: #{vocos_decoder_forward.4} parent=1 // loop_header
      %s19 = sphi 0, %s23
      %p20 = scmp.ge.s32.totalorder %s19, 6
      %s26 = sphi 0, %s38
      %s27 = sphi 0, %s34
      %s28 = sphi 0, %s26
      %s29 = sphi 0, %s27
      %s30 = sphi 0, %s28
      %s31 = sphi 0, %s29
      %s41 = sphi 0, %s43
      %s44 = sphi 0, %s41
      %s45 = sphi 0, %s44
      %s61 = sphi 0, %s45
      %s67 = sphi 0, %s69
      %s70 = sphi 0, %s67
      %s71 = sphi 0, %s70
      %s87 = sphi 0, %s71
      %s93 = sphi 0, %s95
      %s96 = sphi 0, %s93
      %s97 = sphi 0, %s96
      %s113 = sphi 0, %s97
      %s119 = sphi 0, %s121
      %s122 = sphi 0, %s119
      %s123 = sphi 0, %s122
      %s139 = sphi 0, %s123
      %s145 = sphi 0, %s147
      %s148 = sphi 0, %s145
      %s149 = sphi 0, %s148
      %s165 = sphi 0, %s149
      %s171 = sphi 0, %s173
      %s174 = sphi 0, %s171
      %s175 = sphi 0, %s174
      %s191 = sphi 0, %s175
      %s197 = sphi 0, %s199
      %s200 = sphi 0, %s197
      %s201 = sphi 0, %s200
      %s217 = sphi 0, %s201
      %s223 = sphi 0, %s225
      %s226 = sphi 0, %s223
      %s227 = sphi 0, %s226
      %s243 = sphi 0, %s227
      %s249 = sphi 0, %s251
      %s252 = sphi 0, %s249
      %s253 = sphi 0, %s252
      %s269 = sphi 0, %s253
      %s275 = sphi 0, %s277
      %s278 = sphi 0, %s275
      %s279 = sphi 0, %s278
      %s295 = sphi 0, %s279
      %s301 = sphi 0, %s303
      %s304 = sphi 0, %s301
      %s305 = sphi 0, %s304
      %s321 = sphi 0, %s305
    $region4: #{vocos_decoder_forward.4} parent=1 // loop_header_branch
      %22 = sbr.rel (%p20) target = $region8
    $region5: #{vocos_decoder_forward.4} parent=1 // loop_body
      %s24 = ssub.s32 %s19, 1
      %s25 = ssub.s32 %s19, 2
      %s32 = sadd.s32 1, %s27
      %p33 = scmp.ge.s32.totalorder %s32, 2
      %s34 = scalar_select %p33, 0, %s32
      %s35 = sadd.s32 1, %s26
      %s36 = scalar_select %p33, %s35, %s26
      %p37 = scmp.ge.s32.totalorder %s36, 2
      %s38 = scalar_select %p37, 0, %s36
      %s39 = ssub.s32 %s26, %s38
      %p40 = scmp.eq.s32.totalorder %s39, 0
      %s42 = sadd.s32 %s41, 1
      %s43 = scalar_select %p40, %s41, %s42
      %p46 = pneg %p40
      %p47 = scmp.eq.s32.totalorder %s19, 3
      %p48 = por %p46, %p47
      %p49 = scmp.ne.s32.totalorder %s41, %s44
      %p50 = scmp.eq.s32.totalorder %s19, 0
      %p51 = por %p49, %p50
      %p52 = scmp.ne.s32.totalorder %s41, %s44
      %p53 = scmp.eq.s32.totalorder %s24, 3
      %p54 = por %p52, %p53
      %p55 = scmp.ne.s32.totalorder %s44, %s45
      %p56 = scmp.eq.s32.totalorder %s24, 0
      %p57 = por %p55, %p56
      %p58 = scmp.ne.s32.totalorder %s44, %s45
      %p59 = scmp.eq.s32.totalorder %s25, 3
      %p60 = por %p58, %p59
      %p62 = scmp.ne.s32.totalorder %s45, %s61
      %p63 = scmp.eq.s32.totalorder %s25, 0
      %p64 = por %p62, %p63
      %s65 = ssub.s32 %s27, %s34
      %p66 = scmp.eq.s32.totalorder %s65, 0
      %s68 = sadd.s32 %s67, 1
      %s69 = scalar_select %p66, %s67, %s68
      %p72 = pneg %p66
      %p73 = scmp.eq.s32.totalorder %s19, 3
      %p74 = por %p72, %p73
      %p75 = scmp.ne.s32.totalorder %s67, %s70
      %p76 = scmp.eq.s32.totalorder %s19, 0
      %p77 = por %p75, %p76
      %p78 = scmp.ne.s32.totalorder %s67, %s70
      %p79 = scmp.eq.s32.totalorder %s24, 3
      %p80 = por %p78, %p79
      %p81 = scmp.ne.s32.totalorder %s70, %s71
      %p82 = scmp.eq.s32.totalorder %s24, 0
      %p83 = por %p81, %p82
      %p84 = scmp.ne.s32.totalorder %s70, %s71
      %p85 = scmp.eq.s32.totalorder %s25, 3
      %p86 = por %p84, %p85
      %p88 = scmp.ne.s32.totalorder %s71, %s87
      %p89 = scmp.eq.s32.totalorder %s25, 0
      %p90 = por %p88, %p89
      %s91 = ssub.s32 %s27, %s34
      %p92 = scmp.eq.s32.totalorder %s91, 0
      %s94 = sadd.s32 %s93, 1
      %s95 = scalar_select %p92, %s93, %s94
      %p98 = pneg %p92
      %p99 = scmp.eq.s32.totalorder %s19, 3
      %p100 = por %p98, %p99
      %p101 = scmp.ne.s32.totalorder %s93, %s96
      %p102 = scmp.eq.s32.totalorder %s19, 0
      %p103 = por %p101, %p102
      %p104 = scmp.ne.s32.totalorder %s93, %s96
      %p105 = scmp.eq.s32.totalorder %s24, 3
      %p106 = por %p104, %p105
      %p107 = scmp.ne.s32.totalorder %s96, %s97
      %p108 = scmp.eq.s32.totalorder %s24, 0
      %p109 = por %p107, %p108
      %p110 = scmp.ne.s32.totalorder %s96, %s97
      %p111 = scmp.eq.s32.totalorder %s25, 3
      %p112 = por %p110, %p111
      %p114 = scmp.ne.s32.totalorder %s97, %s113
      %p115 = scmp.eq.s32.totalorder %s25, 0
      %p116 = por %p114, %p115
      %s117 = ssub.s32 %s27, %s34
      %p118 = scmp.eq.s32.totalorder %s117, 0
      %s120 = sadd.s32 %s119, 1
      %s121 = scalar_select %p118, %s119, %s120
      %p124 = pneg %p118
      %p125 = scmp.eq.s32.totalorder %s19, 3
      %p126 = por %p124, %p125
      %p127 = scmp.ne.s32.totalorder %s119, %s122
      %p128 = scmp.eq.s32.totalorder %s19, 0
      %p129 = por %p127, %p128
      %p130 = scmp.ne.s32.totalorder %s119, %s122
      %p131 = scmp.eq.s32.totalorder %s24, 3
      %p132 = por %p130, %p131
      %p133 = scmp.ne.s32.totalorder %s122, %s123
      %p134 = scmp.eq.s32.totalorder %s24, 0
      %p135 = por %p133, %p134
      %p136 = scmp.ne.s32.totalorder %s122, %s123
      %p137 = scmp.eq.s32.totalorder %s25, 3
      %p138 = por %p136, %p137
      %p140 = scmp.ne.s32.totalorder %s123, %s139
      %p141 = scmp.eq.s32.totalorder %s25, 0
      %p142 = por %p140, %p141
      %s143 = ssub.s32 %s27, %s34
      %p144 = scmp.eq.s32.totalorder %s143, 0
      %s146 = sadd.s32 %s145, 1
      %s147 = scalar_select %p144, %s145, %s146
      %p150 = pneg %p144
      %p151 = scmp.eq.s32.totalorder %s19, 3
      %p152 = por %p150, %p151
      %p153 = scmp.ne.s32.totalorder %s145, %s148
      %p154 = scmp.eq.s32.totalorder %s19, 0
      %p155 = por %p153, %p154
      %p156 = scmp.ne.s32.totalorder %s145, %s148
      %p157 = scmp.eq.s32.totalorder %s24, 3
      %p158 = por %p156, %p157
      %p159 = scmp.ne.s32.totalorder %s148, %s149
      %p160 = scmp.eq.s32.totalorder %s24, 0
      %p161 = por %p159, %p160
      %p162 = scmp.ne.s32.totalorder %s148, %s149
      %p163 = scmp.eq.s32.totalorder %s25, 3
      %p164 = por %p162, %p163
      %p166 = scmp.ne.s32.totalorder %s149, %s165
      %p167 = scmp.eq.s32.totalorder %s25, 0
      %p168 = por %p166, %p167
      %s169 = ssub.s32 %s27, %s34
      %p170 = scmp.eq.s32.totalorder %s169, 0
      %s172 = sadd.s32 %s171, 1
      %s173 = scalar_select %p170, %s171, %s172
      %p176 = pneg %p170
      %p177 = scmp.eq.s32.totalorder %s19, 3
      %p178 = por %p176, %p177
      %p179 = scmp.ne.s32.totalorder %s171, %s174
      %p180 = scmp.eq.s32.totalorder %s19, 0
      %p181 = por %p179, %p180
      %p182 = scmp.ne.s32.totalorder %s171, %s174
      %p183 = scmp.eq.s32.totalorder %s24, 3
      %p184 = por %p182, %p183
      %p185 = scmp.ne.s32.totalorder %s174, %s175
      %p186 = scmp.eq.s32.totalorder %s24, 0
      %p187 = por %p185, %p186
      %p188 = scmp.ne.s32.totalorder %s174, %s175
      %p189 = scmp.eq.s32.totalorder %s25, 3
      %p190 = por %p188, %p189
      %p192 = scmp.ne.s32.totalorder %s175, %s191
      %p193 = scmp.eq.s32.totalorder %s25, 0
      %p194 = por %p192, %p193
      %s195 = ssub.s32 %s27, %s34
      %p196 = scmp.eq.s32.totalorder %s195, 0
      %s198 = sadd.s32 %s197, 1
      %s199 = scalar_select %p196, %s197, %s198
      %p202 = pneg %p196
      %p203 = scmp.eq.s32.totalorder %s19, 3
      %p204 = por %p202, %p203
      %p205 = scmp.ne.s32.totalorder %s197, %s200
      %p206 = scmp.eq.s32.totalorder %s19, 0
      %p207 = por %p205, %p206
      %p208 = scmp.ne.s32.totalorder %s197, %s200
      %p209 = scmp.eq.s32.totalorder %s24, 3
      %p210 = por %p208, %p209
      %p211 = scmp.ne.s32.totalorder %s200, %s201
      %p212 = scmp.eq.s32.totalorder %s24, 0
      %p213 = por %p211, %p212
      %p214 = scmp.ne.s32.totalorder %s200, %s201
      %p215 = scmp.eq.s32.totalorder %s25, 3
      %p216 = por %p214, %p215
      %p218 = scmp.ne.s32.totalorder %s201, %s217
      %p219 = scmp.eq.s32.totalorder %s25, 0
      %p220 = por %p218, %p219
      %s221 = ssub.s32 %s27, %s34
      %p222 = scmp.eq.s32.totalorder %s221, 0
      %s224 = sadd.s32 %s223, 1
      %s225 = scalar_select %p222, %s223, %s224
      %p228 = pneg %p222
      %p229 = scmp.eq.s32.totalorder %s19, 3
      %p230 = por %p228, %p229
      %p231 = scmp.ne.s32.totalorder %s223, %s226
      %p232 = scmp.eq.s32.totalorder %s19, 0
      %p233 = por %p231, %p232
      %p234 = scmp.ne.s32.totalorder %s223, %s226
      %p235 = scmp.eq.s32.totalorder %s24, 3
      %p236 = por %p234, %p235
      %p237 = scmp.ne.s32.totalorder %s226, %s227
      %p238 = scmp.eq.s32.totalorder %s24, 0
      %p239 = por %p237, %p238
      %p240 = scmp.ne.s32.totalorder %s226, %s227
      %p241 = scmp.eq.s32.totalorder %s25, 3
      %p242 = por %p240, %p241
      %p244 = scmp.ne.s32.totalorder %s227, %s243
      %p245 = scmp.eq.s32.totalorder %s25, 0
      %p246 = por %p244, %p245
      %s247 = ssub.s32 %s27, %s34
      %p248 = scmp.eq.s32.totalorder %s247, 0
      %s250 = sadd.s32 %s249, 1
      %s251 = scalar_select %p248, %s249, %s250
      %p254 = pneg %p248
      %p255 = scmp.eq.s32.totalorder %s19, 3
      %p256 = por %p254, %p255
      %p257 = scmp.ne.s32.totalorder %s249, %s252
      %p258 = scmp.eq.s32.totalorder %s19, 0
      %p259 = por %p257, %p258
      %p260 = scmp.ne.s32.totalorder %s249, %s252
      %p261 = scmp.eq.s32.totalorder %s24, 3
      %p262 = por %p260, %p261
      %p263 = scmp.ne.s32.totalorder %s252, %s253
      %p264 = scmp.eq.s32.totalorder %s24, 0
      %p265 = por %p263, %p264
      %p266 = scmp.ne.s32.totalorder %s252, %s253
      %p267 = scmp.eq.s32.totalorder %s25, 3
      %p268 = por %p266, %p267
      %p270 = scmp.ne.s32.totalorder %s253, %s269
      %p271 = scmp.eq.s32.totalorder %s25, 0
      %p272 = por %p270, %p271
      %s273 = ssub.s32 %s27, %s34
      %p274 = scmp.eq.s32.totalorder %s273, 0
      %s276 = sadd.s32 %s275, 1
      %s277 = scalar_select %p274, %s275, %s276
      %p280 = pneg %p274
      %p281 = scmp.eq.s32.totalorder %s19, 3
      %p282 = por %p280, %p281
      %p283 = scmp.ne.s32.totalorder %s275, %s278
      %p284 = scmp.eq.s32.totalorder %s19, 0
      %p285 = por %p283, %p284
      %p286 = scmp.ne.s32.totalorder %s275, %s278
      %p287 = scmp.eq.s32.totalorder %s24, 3
      %p288 = por %p286, %p287
      %p289 = scmp.ne.s32.totalorder %s278, %s279
      %p290 = scmp.eq.s32.totalorder %s24, 0
      %p291 = por %p289, %p290
      %p292 = scmp.ne.s32.totalorder %s278, %s279
      %p293 = scmp.eq.s32.totalorder %s25, 3
      %p294 = por %p292, %p293
      %p296 = scmp.ne.s32.totalorder %s279, %s295
      %p297 = scmp.eq.s32.totalorder %s25, 0
      %p298 = por %p296, %p297
      %s299 = ssub.s32 %s26, %s38
      %p300 = scmp.eq.s32.totalorder %s299, 0
      %s302 = sadd.s32 %s301, 1
      %s303 = scalar_select %p300, %s301, %s302
      %p306 = pneg %p300
      %p307 = scmp.eq.s32.totalorder %s19, 3
      %p308 = por %p306, %p307
      %p309 = scmp.ne.s32.totalorder %s301, %s304
      %p310 = scmp.eq.s32.totalorder %s19, 0
      %p311 = por %p309, %p310
      %p312 = scmp.ne.s32.totalorder %s301, %s304
      %p313 = scmp.eq.s32.totalorder %s24, 3
      %p314 = por %p312, %p313
      %p315 = scmp.ne.s32.totalorder %s304, %s305
      %p316 = scmp.eq.s32.totalorder %s24, 0
      %p317 = por %p315, %p316
      %p318 = scmp.ne.s32.totalorder %s304, %s305
      %p319 = scmp.eq.s32.totalorder %s25, 3
      %p320 = por %p318, %p319
      %p322 = scmp.ne.s32.totalorder %s305, %s321
      %p323 = scmp.eq.s32.totalorder %s25, 0
      %p324 = por %p322, %p323
      %p325 = scmp.le.s32.totalorder 1, %s19
      %p326 = scmp.lt.s32.totalorder %s19, 5
      %p327 = pnand %p325, %p326
      %p328 = pneg %p327
      // Predicated region
      $region9: #{vocos_decoder_forward.4} parent=5 // pred_check
        _
      $region10: #{vocos_decoder_forward.4} parent=5 // pred_check_branch
        %330 = sbr.rel (%p327) target = $region12
      $region11: #{vocos_decoder_forward.4} parent=5 // pred_region
        %s331 = ssub.s32 %s19, 1
      $region12: #{vocos_decoder_forward.4} parent=5 // pred_fallthru
        _
      %p332 = scmp.lt.s32.totalorder %s19, 4
      // Predicated region
      $region13: #{vocos_decoder_forward.4} parent=5 // pred_check
        %p333 = pneg %p332
      $region14: #{vocos_decoder_forward.4} parent=5 // pred_check_branch
        %335 = sbr.rel (%p333) target = $region16
      $region15: #{vocos_decoder_forward.4} parent=5 // pred_region
        // Predicated region
        $region17: #{vocos_decoder_forward.4} parent=15 // pred_check
          %p336 = pneg %p51
        $region18: #{vocos_decoder_forward.4} parent=15 // pred_check_branch
          %338 = sbr.rel (%p336) target = $region20
        $region19: #{vocos_decoder_forward.4} parent=15 // pred_region
          %p339 = scmp.lt.s32.totalorder %s26, 1
          %s340 = scalar_select %p339, %s26, 1
          %s341 = smul.addr %s340, 2
          %s342 = smul.addr %s341, 8
          %s343 = scalar_lea.vmem %s0, %s342
        $region20: #{vocos_decoder_forward.4} parent=15 // pred_fallthru
          _
        // Predicated region
        $region21: #{vocos_decoder_forward.4} parent=15 // pred_check
          %p344 = pneg %p77
        $region22: #{vocos_decoder_forward.4} parent=15 // pred_check_branch
          %346 = sbr.rel (%p344) target = $region24
        $region23: #{vocos_decoder_forward.4} parent=15 // pred_region
          %p347 = scmp.lt.s32.totalorder %s27, 1
          %s348 = scalar_select %p347, %s27, 1
          %s349 = smul.addr %s348, 8
          %s350 = scalar_lea.vmem %s1, %s349
        $region24: #{vocos_decoder_forward.4} parent=15 // pred_fallthru
          _
        // Predicated region
        $region25: #{vocos_decoder_forward.4} parent=15 // pred_check
          %p351 = pneg %p103
        $region26: #{vocos_decoder_forward.4} parent=15 // pred_check_branch
          %353 = sbr.rel (%p351) target = $region28
        $region27: #{vocos_decoder_forward.4} parent=15 // pred_region
          %p354 = scmp.lt.s32.totalorder %s27, 1
          %s355 = scalar_select %p354, %s27, 1
          %s356 = scalar_lea.vmem %s2, %s355
        $region28: #{vocos_decoder_forward.4} parent=15 // pred_fallthru
          _
        // Predicated region
        $region29: #{vocos_decoder_forward.4} parent=15 // pred_check
          %p357 = pneg %p129
        $region30: #{vocos_decoder_forward.4} parent=15 // pred_check_branch
          %359 = sbr.rel (%p357) target = $region32
        $region31: #{vocos_decoder_forward.4} parent=15 // pred_region
          %p360 = scmp.lt.s32.totalorder %s27, 1
          %s361 = scalar_select %p360, %s27, 1
          %s362 = scalar_lea.vmem %s3, %s361
        $region32: #{vocos_decoder_forward.4} parent=15 // pred_fallthru
          _
        // Predicated region
        $region33: #{vocos_decoder_forward.4} parent=15 // pred_check
          %p363 = pneg %p155
        $region34: #{vocos_decoder_forward.4} parent=15 // pred_check_branch
          %365 = sbr.rel (%p363) target = $region36
        $region35: #{vocos_decoder_forward.4} parent=15 // pred_region
          %p366 = scmp.lt.s32.totalorder %s27, 1
          %s367 = scalar_select %p366, %s27, 1
          %s368 = scalar_lea.vmem %s4, %s367
        $region36: #{vocos_decoder_forward.4} parent=15 // pred_fallthru
          _
        // Predicated region
        $region37: #{vocos_decoder_forward.4} parent=15 // pred_check
          %p369 = pneg %p181
        $region38: #{vocos_decoder_forward.4} parent=15 // pred_check_branch
          %371 = sbr.rel (%p369) target = $region40
        $region39: #{vocos_decoder_forward.4} parent=15 // pred_region
          %p372 = scmp.lt.s32.totalorder %s27, 1
          %s373 = scalar_select %p372, %s27, 1
          %s374 = smul.addr %s373, 32
          %s375 = smul.addr %s374, 4
          %s376 = scalar_lea.vmem %s5, %s375
        $region40: #{vocos_decoder_forward.4} parent=15 // pred_fallthru
          _
        // Predicated region
        $region41: #{vocos_decoder_forward.4} parent=15 // pred_check
          %p377 = pneg %p207
        $region42: #{vocos_decoder_forward.4} parent=15 // pred_check_branch
          %379 = sbr.rel (%p377) target = $region44
        $region43: #{vocos_decoder_forward.4} parent=15 // pred_region
          %p380 = scmp.lt.s32.totalorder %s27, 1
          %s381 = scalar_select %p380, %s27, 1
          %s382 = smul.addr %s381, 2
          %s383 = scalar_lea.vmem %s6, %s382
        $region44: #{vocos_decoder_forward.4} parent=15 // pred_fallthru
          _
        // Predicated region
        $region45: #{vocos_decoder_forward.4} parent=15 // pred_check
          %p384 = pneg %p233
        $region46: #{vocos_decoder_forward.4} parent=15 // pred_check_branch
          %386 = sbr.rel (%p384) target = $region48
        $region47: #{vocos_decoder_forward.4} parent=15 // pred_region
          %s387 = sand.u32 %s223, 1
          %s388 = scalar_lea.sflag [#allocation4], %s387
          %s389 = sand.u32 %s223, 1
          %s390 = smul.addr %s389, 128
          %s391 = scalar_lea.vmem [#allocation3], %s390
          %s393 = ssub.s32 2048, 2048
          %394 = vsyncadd %s388, %s393
          %s395 = smul.addr %s27, 32
          %s396 = smul.addr %s395, 64
          %s397 = scalar_lea.hbm %s7, %s396
          %s398 = sshll.u32 %s391, 4
          %s399 = int_to_ptr.vmem [resolvable:$true] %s398
          %404 = dma.hbm_to_vmem [thread:$0]  %s397, 2048, %s399, %s388, 64, 64, 4
        $region48: #{vocos_decoder_forward.4} parent=15 // pred_fallthru
          _
        // Predicated region
        $region49: #{vocos_decoder_forward.4} parent=15 // pred_check
          %p405 = pneg %p259
        $region50: #{vocos_decoder_forward.4} parent=15 // pred_check_branch
          %407 = sbr.rel (%p405) target = $region52
        $region51: #{vocos_decoder_forward.4} parent=15 // pred_region
          %p408 = scmp.lt.s32.totalorder %s27, 1
          %s409 = scalar_select %p408, %s27, 1
          %s410 = scalar_lea.vmem %s8, %s409
        $region52: #{vocos_decoder_forward.4} parent=15 // pred_fallthru
          _
        // Predicated region
        $region53: #{vocos_decoder_forward.4} parent=15 // pred_check
          %p411 = pneg %p285
        $region54: #{vocos_decoder_forward.4} parent=15 // pred_check_branch
          %413 = sbr.rel (%p411) target = $region56
        $region55: #{vocos_decoder_forward.4} parent=15 // pred_region
          %p414 = scmp.lt.s32.totalorder %s27, 1
          %s415 = scalar_select %p414, %s27, 1
          %s416 = scalar_lea.vmem %s9, %s415
        $region56: #{vocos_decoder_forward.4} parent=15 // pred_fallthru
          _
      $region16: #{vocos_decoder_forward.4} parent=5 // pred_fallthru
        _
      %p417 = scmp.le.s32.totalorder 1, %s19
      %p418 = scmp.lt.s32.totalorder %s19, 5
      %p419 = pnand %p417, %p418
      %p420 = pneg %p419
      // Predicated region
      $region57: #{vocos_decoder_forward.4} parent=5 // pred_check
        _
      $region58: #{vocos_decoder_forward.4} parent=5 // pred_check_branch
        %422 = sbr.rel (%p419) target = $region60
      $region59: #{vocos_decoder_forward.4} parent=5 // pred_region
        %s423 = ssub.s32 %s19, 1
        %s424 = sand.u32 %s226, 1
        %s425 = scalar_lea.sflag [#allocation4], %s424
        %s426 = sand.u32 %s226, 1
        %s427 = smul.addr %s426, 128
        %s428 = scalar_lea.vmem [#allocation3], %s427
        // Predicated region
        $region61: #{vocos_decoder_forward.4} parent=59 // pred_check
          %p429 = pneg %p239
        $region62: #{vocos_decoder_forward.4} parent=59 // pred_check_branch
          %431 = sbr.rel (%p429) target = $region64
        $region63: #{vocos_decoder_forward.4} parent=59 // pred_region
          %432 = dma.done %s425, 2048
        $region64: #{vocos_decoder_forward.4} parent=59 // pred_fallthru
          _
        %p433 = scmp.lt.s32.totalorder %s28, 1
        %s434 = scalar_select %p433, %s28, 1
        %s435 = smul.addr %s434, 2
        %s436 = smul.addr %s435, 8
        %s437 = scalar_lea.vmem %s0, %s436
        %p438 = pneg %p57
        %p439 = pneg %p54
        %p440 = scmp.lt.s32.totalorder %s29, 1
        %s441 = scalar_select %p440, %s29, 1
        %s442 = smul.addr %s441, 8
        %s443 = scalar_lea.vmem %s1, %s442
        %p444 = pneg %p83
        %p445 = pneg %p80
        %p446 = scmp.lt.s32.totalorder %s29, 1
        %s447 = scalar_select %p446, %s29, 1
        %s448 = scalar_lea.vmem %s2, %s447
        %p449 = pneg %p109
        %p450 = pneg %p106
        %p451 = scmp.lt.s32.totalorder %s29, 1
        %s452 = scalar_select %p451, %s29, 1
        %s453 = scalar_lea.vmem %s3, %s452
        %p454 = pneg %p135
        %p455 = pneg %p132
        %p456 = scmp.lt.s32.totalorder %s29, 1
        %s457 = scalar_select %p456, %s29, 1
        %s458 = scalar_lea.vmem %s4, %s457
        %p459 = pneg %p161
        %p460 = pneg %p158
        %p461 = scmp.lt.s32.totalorder %s29, 1
        %s462 = scalar_select %p461, %s29, 1
        %s463 = smul.addr %s462, 32
        %s464 = smul.addr %s463, 4
        %s465 = scalar_lea.vmem %s5, %s464
        %p466 = pneg %p187
        %p467 = pneg %p184
        %p468 = scmp.lt.s32.totalorder %s29, 1
        %s469 = scalar_select %p468, %s29, 1
        %s470 = smul.addr %s469, 2
        %s471 = scalar_lea.vmem %s6, %s470
        %p472 = pneg %p213
        %p473 = pneg %p210
        %s474 = sand.u32 %s226, 1
        %s475 = scalar_lea.sflag [#allocation4], %s474
        %s476 = sand.u32 %s226, 1
        %s477 = smul.addr %s476, 128
        %s478 = scalar_lea.vmem [#allocation3], %s477
        %p479 = pneg %p239
        %p480 = pneg %p236
        %p481 = scmp.lt.s32.totalorder %s29, 1
        %s482 = scalar_select %p481, %s29, 1
        %s483 = scalar_lea.vmem %s8, %s482
        %p484 = pneg %p265
        %p485 = pneg %p262
        %p486 = scmp.lt.s32.totalorder %s29, 1
        %s487 = scalar_select %p486, %s29, 1
        %s488 = scalar_lea.vmem %s9, %s487
        %p489 = pneg %p291
        %p490 = pneg %p288
        %p491 = pneg %p317
        %p492 = pneg %p314
        %p493 = scmp.lt.s32.totalorder %s28, 1
        %s494 = scalar_select %p493, %s28, 1
        %s495 = smul.addr %s494, 2
        %s496 = smul.addr %s495, 8
        %s497 = scalar_lea.vmem %s10, %s496
        %p498 = scmp.lt.s32.totalorder %s28, 1
        %s499 = scalar_select %p498, %s28, 1
        %s500 = smul.addr %s499, 2
        %s501 = smul.addr %s500, 8
        %s502 = scalar_lea.vmem %s0, %s501
        %p503 = scmp.lt.s32.totalorder %s29, 1
        %s504 = scalar_select %p503, %s29, 1
        %s505 = smul.addr %s504, 8
        %s506 = scalar_lea.vmem %s1, %s505
        %p507 = scmp.lt.s32.totalorder %s29, 1
        %s508 = scalar_select %p507, %s29, 1
        %s509 = scalar_lea.vmem %s2, %s508
        %p510 = scmp.lt.s32.totalorder %s29, 1
        %s511 = scalar_select %p510, %s29, 1
        %s512 = scalar_lea.vmem %s3, %s511
        %p513 = scmp.lt.s32.totalorder %s29, 1
        %s514 = scalar_select %p513, %s29, 1
        %s515 = scalar_lea.vmem %s4, %s514
        %p516 = scmp.lt.s32.totalorder %s29, 1
        %s517 = scalar_select %p516, %s29, 1
        %s518 = smul.addr %s517, 32
        %s519 = smul.addr %s518, 4
        %s520 = scalar_lea.vmem %s5, %s519
        %p521 = scmp.lt.s32.totalorder %s29, 1
        %s522 = scalar_select %p521, %s29, 1
        %s523 = smul.addr %s522, 2
        %s524 = scalar_lea.vmem %s6, %s523
        %p525 = scmp.lt.s32.totalorder %s29, 1
        %s526 = scalar_select %p525, %s29, 1
        %s527 = scalar_lea.vmem %s8, %s526
        %p528 = scmp.lt.s32.totalorder %s29, 1
        %s529 = scalar_select %p528, %s29, 1
        %s530 = scalar_lea.vmem %s9, %s529
        %p531 = scmp.lt.s32.totalorder %s28, 1
        %s532 = scalar_select %p531, %s28, 1
        %s533 = smul.addr %s532, 2
        %s534 = smul.addr %s533, 8
        %s535 = scalar_lea.vmem %s10, %s534
        %p537 = scmp.eq.s32.totalorder %s29, 0
        // Predicated region
        $region65: #{vocos_decoder_forward.4} parent=59 // pred_check
          %p538 = pneg %p537
        $region66: #{vocos_decoder_forward.4} parent=59 // pred_check_branch
          %540 = sbr.rel (%p538) target = $region68
        $region67: #{vocos_decoder_forward.4} parent=59 // pred_region
          %v541 = vld [vmem:[%s502] sm:$0xff]
          %v542 = vld [vmem:[%s502 + $0x8] sm:$0xff]
          %543 = vst [vmem:[#allocation2] sm:$0xff] %v541
          %544 = vst [vmem:[#allocation2 + $0x8] sm:$0xff] %v542
        $region68: #{vocos_decoder_forward.4} parent=59 // pred_fallthru
          _
        %v545 = vld [vmem:[#allocation2] sm:$0xff]
        %v546 = vld [vmem:[#allocation2 + $0x8] sm:$0xff]
        %v547 = vld [vmem:[%s506] sm:$0x7f]
        %v548 = vlaneseq
        %v549 = vshrl.u32 %v548, 7
        %v550 = vadd.s32 %v549, 8
        %v551 = vrot.slane %v545, 5
        %v552 = vrot.slane %v546, 5
        %vm553 = vcmp.lt.s32.totalorder %v549, 3
        %v554 = vsel %vm553, %v551, %v552
        %v555 = vsel %vm553, %v552, %v551
        %vm556 = vcmp.ge.s32.totalorder %v549, 3
        %vm557 = vcmp.ge.s32.totalorder %v550, 3
        %v558 = vsel %vm556, %v555, 0.0
        %v559 = vsel %vm557, %v554, 0.0
        %v560 = vlaneseq
        %v561 = vshrl.u32 %v560, 7
        %v562 = vsub.s32 0, %v561
        %v563 = vrot.slane %v547, %v562
        %v564 = vmul.f32 %v558, %v563
        %v565 = vmul.f32 %v559, %v563
        %v566 = vadd.f32 %v564, 0.0
        %v567 = vadd.f32 %v565, 0.0
        %v568 = vrot.slane %v545, 6
        %v569 = vrot.slane %v546, 6
        %vm570 = vcmp.lt.s32.totalorder %v549, 2
        %v571 = vsel %vm570, %v568, %v569
        %v572 = vsel %vm570, %v569, %v568
        %vm573 = vcmp.ge.s32.totalorder %v549, 2
        %vm574 = vcmp.ge.s32.totalorder %v550, 2
        %v575 = vsel %vm573, %v572, 0.0
        %v576 = vsel %vm574, %v571, 0.0
        %v577 = vlaneseq
        %v578 = vshrl.u32 %v577, 7
        %v579 = vsub.s32 1, %v578
        %v580 = vrot.slane %v547, %v579
        %v581 = vmul.f32 %v575, %v580
        %v582 = vmul.f32 %v576, %v580
        %v583 = vadd.f32 %v566, %v581
        %v584 = vadd.f32 %v567, %v582
        %v585 = vrot.slane %v545, 7
        %v586 = vrot.slane %v546, 7
        %vm587 = vcmp.lt.s32.totalorder %v549, 1
        %v588 = vsel %vm587, %v585, %v586
        %v589 = vsel %vm587, %v586, %v585
        %vm590 = vcmp.ge.s32.totalorder %v549, 1
        %vm591 = vcmp.ge.s32.totalorder %v550, 1
        %v592 = vsel %vm590, %v589, 0.0
        %v593 = vsel %vm591, %v588, 0.0
        %v594 = vlaneseq
        %v595 = vshrl.u32 %v594, 7
        %v596 = vsub.s32 2, %v595
        %v597 = vrot.slane %v547, %v596
        %v598 = vmul.f32 %v592, %v597
        %v599 = vmul.f32 %v593, %v597
        %v600 = vadd.f32 %v583, %v598
        %v601 = vadd.f32 %v584, %v599
        %v602 = vlaneseq
        %v603 = vshrl.u32 %v602, 7
        %v604 = vsub.s32 3, %v603
        %v605 = vrot.slane %v547, %v604
        %v606 = vmul.f32 %v545, %v605
        %v607 = vmul.f32 %v546, %v605
        %v608 = vadd.f32 %v600, %v606
        %v609 = vadd.f32 %v601, %v607
        %v610 = vrot.slane %v545, 1
        %v611 = vrot.slane %v546, 1
        %vm612 = vcmp.lt.s32.totalorder %v549, 7
        %v613 = vsel %vm612, %v610, %v611
        %v614 = vsel %vm612, %v611, %v610
        %vm615 = vcmp.lt.s32.totalorder %v549, 15
        %vm616 = vcmp.lt.s32.totalorder %v550, 15
        %v617 = vsel %vm615, %v613, 0.0
        %v618 = vsel %vm616, %v614, 0.0
        %v619 = vlaneseq
        %v620 = vshrl.u32 %v619, 7
        %v621 = vsub.s32 4, %v620
        %v622 = vrot.slane %v547, %v621
        %v623 = vmul.f32 %v617, %v622
        %v624 = vmul.f32 %v618, %v622
        %v625 = vadd.f32 %v608, %v623
        %v626 = vadd.f32 %v609, %v624
        %v627 = vrot.slane %v545, 2
        %v628 = vrot.slane %v546, 2
        %vm629 = vcmp.lt.s32.totalorder %v549, 6
        %v630 = vsel %vm629, %v627, %v628
        %v631 = vsel %vm629, %v628, %v627
        %vm632 = vcmp.lt.s32.totalorder %v549, 14
        %vm633 = vcmp.lt.s32.totalorder %v550, 14
        %v634 = vsel %vm632, %v630, 0.0
        %v635 = vsel %vm633, %v631, 0.0
        %v636 = vlaneseq
        %v637 = vshrl.u32 %v636, 7
        %v638 = vsub.s32 5, %v637
        %v639 = vrot.slane %v547, %v638
        %v640 = vmul.f32 %v634, %v639
        %v641 = vmul.f32 %v635, %v639
        %v642 = vadd.f32 %v625, %v640
        %v643 = vadd.f32 %v626, %v641
        %v644 = vrot.slane %v545, 3
        %v645 = vrot.slane %v546, 3
        %vm646 = vcmp.lt.s32.totalorder %v549, 5
        %v647 = vsel %vm646, %v644, %v645
        %v648 = vsel %vm646, %v645, %v644
        %vm649 = vcmp.lt.s32.totalorder %v549, 13
        %vm650 = vcmp.lt.s32.totalorder %v550, 13
        %v651 = vsel %vm649, %v647, 0.0
        %v652 = vsel %vm650, %v648, 0.0
        %v653 = vlaneseq
        %v654 = vshrl.u32 %v653, 7
        %v655 = vsub.s32 6, %v654
        %v656 = vrot.slane %v547, %v655
        %v657 = vmul.f32 %v651, %v656
        %v658 = vmul.f32 %v652, %v656
        %v659 = vadd.f32 %v642, %v657
        %v660 = vadd.f32 %v643, %v658
        %v661 = vld [vmem:[%s509] sm:$0x1]
        %v663 = vlaneseq
        %v664 = vshrl.u32 %v663, 7
        %v665 = vsub.s32 0, %v664
        %v666 = vrot.slane %v661, %v665
        %v668 = vadd.f32 %v659, %v666
        %v669 = vadd.f32 %v660, %v666
        %v670 = vld [vmem:[%s512] sm:$0x1]
        %v671 = vld [vmem:[%s515] sm:$0x1]
        %672 = vadd.xlane.f32.xlu0 %v668
        %v673 = vpop.xlane.xlu0 %672
        %674 = vadd.xlane.f32.xlu0 %v669
        %v675 = vpop.xlane.xlu0 %674
        %v676 = vrcp.pop 128.0
        %v677 = vmul.f32 %v673, %v676
        %v678 = vmul.f32 %v675, %v676
        %v679 = vsub.f32 %v668, %v677
        %v680 = vsub.f32 %v669, %v678
        %v681 = vmul.f32 %v679, %v679
        %v682 = vmul.f32 %v680, %v680
        %683 = vadd.xlane.f32.xlu0 %v681
        %v684 = vpop.xlane.xlu0 %683
        %685 = vadd.xlane.f32.xlu0 %v682
        %v686 = vpop.xlane.xlu0 %685
        %v687 = vmul.f32 %v684, %v676
        %v688 = vmul.f32 %v686, %v676
        %v689 = vadd.f32 %v687, 1e-06
        %v690 = vadd.f32 %v688, 1e-06
        %v691 = vrsqrt.pop %v689
        %v692 = vrsqrt.pop %v690
        %v693 = vmul.f32 %v679, %v691
        %v694 = vmul.f32 %v680, %v692
        %v696 = vlaneseq
        %v697 = vshrl.u32 %v696, 7
        %v698 = vsub.s32 0, %v697
        %v699 = vrot.slane %v670, %v698
        %v701 = vmul.f32 %v693, %v699
        %v702 = vmul.f32 %v694, %v699
        %v704 = vlaneseq
        %v705 = vshrl.u32 %v704, 7
        %v706 = vsub.s32 0, %v705
        %v707 = vrot.slane %v671, %v706
        %v709 = vadd.f32 %v701, %v707
        %v710 = vadd.f32 %v702, %v707
        %v711 = vld [vmem:[%s520] sm:$0xff]
        %v712 = vld [vmem:[%s520 + $0x8] sm:$0xff]
        %v713 = vld [vmem:[%s520 + $0x10] sm:$0xff]
        %v714 = vld [vmem:[%s520 + $0x18] sm:$0xff]
        %v715 = vld [vmem:[%s520 + $0x20] sm:$0xff]
        %v716 = vld [vmem:[%s520 + $0x28] sm:$0xff]
        %v717 = vld [vmem:[%s520 + $0x30] sm:$0xff]
        %v718 = vld [vmem:[%s520 + $0x38] sm:$0xff]
        %v719 = vld [vmem:[%s520 + $0x40] sm:$0xff]
        %v720 = vld [vmem:[%s520 + $0x48] sm:$0xff]
        %v721 = vld [vmem:[%s520 + $0x50] sm:$0xff]
        %v722 = vld [vmem:[%s520 + $0x58] sm:$0xff]
        %v723 = vld [vmem:[%s520 + $0x60] sm:$0xff]
        %v724 = vld [vmem:[%s520 + $0x68] sm:$0xff]
        %v725 = vld [vmem:[%s520 + $0x70] sm:$0xff]
        %v726 = vld [vmem:[%s520 + $0x78] sm:$0xff]
        %v727 = vld [vmem:[%s428] sm:$0xf]
        %v728 = vld [vmem:[%s428 + $0x4] sm:$0xf]
        %v729 = vld [vmem:[%s428 + $0x8] sm:$0xf]
        %v730 = vld [vmem:[%s428 + $0xc] sm:$0xf]
        %v731 = vld [vmem:[%s428 + $0x10] sm:$0xf]
        %v732 = vld [vmem:[%s428 + $0x14] sm:$0xf]
        %v733 = vld [vmem:[%s428 + $0x18] sm:$0xf]
        %v734 = vld [vmem:[%s428 + $0x1c] sm:$0xf]
        %v735 = vld [vmem:[%s428 + $0x20] sm:$0xf]
        %v736 = vld [vmem:[%s428 + $0x24] sm:$0xf]
        %v737 = vld [vmem:[%s428 + $0x28] sm:$0xf]
        %v738 = vld [vmem:[%s428 + $0x2c] sm:$0xf]
        %v739 = vld [vmem:[%s428 + $0x30] sm:$0xf]
        %v740 = vld [vmem:[%s428 + $0x34] sm:$0xf]
        %v741 = vld [vmem:[%s428 + $0x38] sm:$0xf]
        %v742 = vld [vmem:[%s428 + $0x3c] sm:$0xf]
        %v743 = vld [vmem:[%s428 + $0x40] sm:$0xf]
        %v744 = vld [vmem:[%s428 + $0x44] sm:$0xf]
        %v745 = vld [vmem:[%s428 + $0x48] sm:$0xf]
        %v746 = vld [vmem:[%s428 + $0x4c] sm:$0xf]
        %v747 = vld [vmem:[%s428 + $0x50] sm:$0xf]
        %v748 = vld [vmem:[%s428 + $0x54] sm:$0xf]
        %v749 = vld [vmem:[%s428 + $0x58] sm:$0xf]
        %v750 = vld [vmem:[%s428 + $0x5c] sm:$0xf]
        %v751 = vld [vmem:[%s428 + $0x60] sm:$0xf]
        %v752 = vld [vmem:[%s428 + $0x64] sm:$0xf]
        %v753 = vld [vmem:[%s428 + $0x68] sm:$0xf]
        %v754 = vld [vmem:[%s428 + $0x6c] sm:$0xf]
        %v755 = vld [vmem:[%s428 + $0x70] sm:$0xf]
        %v756 = vld [vmem:[%s428 + $0x74] sm:$0xf]
        %v757 = vld [vmem:[%s428 + $0x78] sm:$0xf]
        %v758 = vld [vmem:[%s428 + $0x7c] sm:$0xf]
        %v759 = vld [vmem:[%s524] sm:$0x3]
        %v760 = vld [vmem:[%s527] sm:$0x1]
        %v761 = vld [vmem:[%s530] sm:$0x1]
        %v762 = vpack.c.bf16 %v710, %v709
        %v764 = vlaneseq
        %v765 = vshrl.u32 %v764, 7
        %v766 = vsub.s32 0, %v765
        %v767 = vrot.slane %v759, %v766
        %v768 = vlaneseq
        %v769 = vshrl.u32 %v768, 7
        %v770 = vsub.s32 1, %v769
        %v771 = vrot.slane %v759, %v770
        %v790 = vunpack.c.l.b16 %v711
        %v791 = vunpack.c.h.b16 %v711
        %v792 = vunpack.c.l.b16 %v712
        %v793 = vunpack.c.h.b16 %v712
        %v794 = vunpack.c.l.b16 %v713
        %v795 = vunpack.c.h.b16 %v713
        %v796 = vunpack.c.l.b16 %v714
        %v797 = vunpack.c.h.b16 %v714
        %v798 = vunpack.c.l.b16 %v715
        %v799 = vunpack.c.h.b16 %v715
        %v800 = vunpack.c.l.b16 %v716
        %v801 = vunpack.c.h.b16 %v716
        %v802 = vunpack.c.l.b16 %v717
        %v803 = vunpack.c.h.b16 %v717
        %v804 = vunpack.c.l.b16 %v718
        %v805 = vunpack.c.h.b16 %v718
        %v806 = vunpack.c.l.b16 %v719
        %v807 = vunpack.c.h.b16 %v719
        %v808 = vunpack.c.l.b16 %v720
        %v809 = vunpack.c.h.b16 %v720
        %v810 = vunpack.c.l.b16 %v721
        %v811 = vunpack.c.h.b16 %v721
        %v812 = vunpack.c.l.b16 %v722
        %v813 = vunpack.c.h.b16 %v722
        %v814 = vunpack.c.l.b16 %v723
        %v815 = vunpack.c.h.b16 %v723
        %v816 = vunpack.c.l.b16 %v724
        %v817 = vunpack.c.h.b16 %v724
        %v818 = vunpack.c.l.b16 %v725
        %v819 = vunpack.c.h.b16 %v725
        %v820 = vunpack.c.l.b16 %v726
        %v821 = vunpack.c.h.b16 %v726
        %v822 = vpack.c.b16 %v792, %v790
        %v823 = vpack.c.b16 %v793, %v791
        %v824 = vpack.c.b16 %v796, %v794
        %v825 = vpack.c.b16 %v797, %v795
        %v826 = vpack.c.b16 %v800, %v798
        %v827 = vpack.c.b16 %v801, %v799
        %v828 = vpack.c.b16 %v804, %v802
        %v829 = vpack.c.b16 %v805, %v803
        %v830 = vpack.c.b16 %v808, %v806
        %v831 = vpack.c.b16 %v809, %v807
        %v832 = vpack.c.b16 %v812, %v810
        %v833 = vpack.c.b16 %v813, %v811
        %v834 = vpack.c.b16 %v816, %v814
        %v835 = vpack.c.b16 %v817, %v815
        %v836 = vpack.c.b16 %v820, %v818
        %v837 = vpack.c.b16 %v821, %v819
        %854 = vmatprep.subr.bf16.mxu0 %v823
        %855 = vmatpush1.bf16.msra.mxu0 %v822
        %856 = vmatprep.subr.bf16.mxu0 %v825
        %857 = vmatpush1.bf16.msra.mxu0 %v824
        %858 = vmatprep.subr.bf16.mxu0 %v827
        %859 = vmatpush1.bf16.msra.mxu0 %v826
        %860 = vmatprep.subr.bf16.mxu0 %v829
        %861 = vmatpush1.bf16.msra.mxu0 %v828
        %862 = vmatprep.subr.bf16.mxu0 %v831
        %863 = vmatpush1.bf16.msra.mxu0 %v830
        %864 = vmatprep.subr.bf16.mxu0 %v833
        %865 = vmatpush1.bf16.msra.mxu0 %v832
        %866 = vmatprep.subr.bf16.mxu0 %v835
        %867 = vmatpush1.bf16.msra.mxu0 %v834
        %868 = vmatprep.subr.bf16.mxu0 %v837
        %869 = vmatpush1.bf16.msra.mxu0 %v836
        %870 = vmatprep.subr.bf16.mxu0 0
        %871 = vmatpush1.bf16.msra.mxu0 0
        %872 = vmatprep.subr.bf16.mxu0 0
        %873 = vmatpush1.bf16.msra.mxu0 0
        %874 = vmatprep.subr.bf16.mxu0 0
        %875 = vmatpush1.bf16.msra.mxu0 0
        %876 = vmatprep.subr.bf16.mxu0 0
        %877 = vmatpush1.bf16.msra.mxu0 0
        %878 = vmatprep.subr.bf16.mxu0 0
        %879 = vmatpush1.bf16.msra.mxu0 0
        %880 = vmatprep.subr.bf16.mxu0 0
        %881 = vmatpush1.bf16.msra.mxu0 0
        %882 = vmatprep.subr.bf16.mxu0 0
        %883 = vmatpush1.bf16.msra.mxu0 0
        %884 = vmatprep.subr.bf16.mxu0 0
        %885 = vmatpush1.bf16.msra.mxu0 0
        %886 = vmatprep.mubr.bf16.mxu0 0
        %887 = vmatmul.mubr.bf16.gmra.mrb[0].mxu0 %v762
        %v888 = vpop.f32.mrb[0].mxu0
        %v889 = vadd.f32 %v767, %v888
        %v890 = vpop.f32.mrb[0].mxu0
        %v891 = vadd.f32 %v771, %v890
        %v892 = vpop.f32.mrb[0].mxu0
        %v893 = vadd.f32 %v767, %v892
        %v894 = vpop.f32.mrb[0].mxu0
        %v895 = vadd.f32 %v771, %v894
        %896 = vdwg.mxu0
        %v897 = vmul.f32 %v889, 0.5
        %v898 = vmul.f32 %v891, 0.5
        %v899 = vmul.f32 %v893, 0.5
        %v900 = vmul.f32 %v895, 0.5
        %v901 = vmul.f32 %v889, 0.044715
        %v902 = vmul.f32 %v891, 0.044715
        %v903 = vmul.f32 %v893, 0.044715
        %v904 = vmul.f32 %v895, 0.044715
        %v905 = vmul.f32 %v901, %v889
        %v906 = vmul.f32 %v902, %v891
        %v907 = vmul.f32 %v903, %v893
        %v908 = vmul.f32 %v904, %v895
        %v909 = vmul.f32 %v905, %v889
        %v910 = vmul.f32 %v906, %v891
        %v911 = vmul.f32 %v907, %v893
        %v912 = vmul.f32 %v908, %v895
        %v913 = vadd.f32 %v889, %v909
        %v914 = vadd.f32 %v891, %v910
        %v915 = vadd.f32 %v893, %v911
        %v916 = vadd.f32 %v895, %v912
        %v917 = vmul.f32 %v913, 0.7978846
        %v918 = vmul.f32 %v914, 0.7978846
        %v919 = vmul.f32 %v915, 0.7978846
        %v920 = vmul.f32 %v916, 0.7978846
        %v921 = vtanh.pop %v917
        %v922 = vtanh.pop %v918
        %v923 = vtanh.pop %v919
        %v924 = vtanh.pop %v920
        %v925 = vadd.f32 %v921, 1.0
        %v926 = vadd.f32 %v922, 1.0
        %v927 = vadd.f32 %v923, 1.0
        %v928 = vadd.f32 %v924, 1.0
        %v929 = vmul.f32 %v897, %v925
        %v930 = vmul.f32 %v898, %v926
        %v931 = vmul.f32 %v899, %v927
        %v932 = vmul.f32 %v900, %v928
        %v933 = vpack.c.bf16 %v931, %v929
        %v934 = vpack.c.bf16 %v932, %v930
        %v936 = vlaneseq
        %v937 = vshrl.u32 %v936, 7
        %v938 = vsub.s32 0, %v937
        %v939 = vrot.slane %v760, %v938
        %v973 = vunpack.c.l.b16 %v727
        %v974 = vunpack.c.l.b16 %v728
        %v975 = vunpack.c.l.b16 %v729
        %v976 = vunpack.c.l.b16 %v730
        %v977 = vunpack.c.l.b16 %v731
        %v978 = vunpack.c.l.b16 %v732
        %v979 = vunpack.c.l.b16 %v733
        %v980 = vunpack.c.l.b16 %v734
        %v981 = vunpack.c.l.b16 %v735
        %v982 = vunpack.c.l.b16 %v736
        %v983 = vunpack.c.l.b16 %v737
        %v984 = vunpack.c.l.b16 %v738
        %v985 = vunpack.c.l.b16 %v739
        %v986 = vunpack.c.l.b16 %v740
        %v987 = vunpack.c.l.b16 %v741
        %v988 = vunpack.c.l.b16 %v742
        %v989 = vunpack.c.l.b16 %v743
        %v990 = vunpack.c.l.b16 %v744
        %v991 = vunpack.c.l.b16 %v745
        %v992 = vunpack.c.l.b16 %v746
        %v993 = vunpack.c.l.b16 %v747
        %v994 = vunpack.c.l.b16 %v748
        %v995 = vunpack.c.l.b16 %v749
        %v996 = vunpack.c.l.b16 %v750
        %v997 = vunpack.c.l.b16 %v751
        %v998 = vunpack.c.l.b16 %v752
        %v999 = vunpack.c.l.b16 %v753
        %v1000 = vunpack.c.l.b16 %v754
        %v1001 = vunpack.c.l.b16 %v755
        %v1002 = vunpack.c.l.b16 %v756
        %v1003 = vunpack.c.l.b16 %v757
        %v1004 = vunpack.c.l.b16 %v758
        %v1005 = vpack.c.b16 %v974, %v973
        %v1006 = vpack.c.b16 %v976, %v975
        %v1007 = vpack.c.b16 %v978, %v977
        %v1008 = vpack.c.b16 %v980, %v979
        %v1009 = vpack.c.b16 %v982, %v981
        %v1010 = vpack.c.b16 %v984, %v983
        %v1011 = vpack.c.b16 %v986, %v985
        %v1012 = vpack.c.b16 %v988, %v987
        %v1013 = vpack.c.b16 %v990, %v989
        %v1014 = vpack.c.b16 %v992, %v991
        %v1015 = vpack.c.b16 %v994, %v993
        %v1016 = vpack.c.b16 %v996, %v995
        %v1017 = vpack.c.b16 %v998, %v997
        %v1018 = vpack.c.b16 %v1000, %v999
        %v1019 = vpack.c.b16 %v1002, %v1001
        %v1020 = vpack.c.b16 %v1004, %v1003
        %1037 = vmatprep.subr.bf16.mxu0 0
        %1038 = vmatpush1.bf16.msra.mxu0 %v1005
        %1039 = vmatprep.subr.bf16.mxu0 0
        %1040 = vmatpush1.bf16.msra.mxu0 %v1006
        %1041 = vmatprep.subr.bf16.mxu0 0
        %1042 = vmatpush1.bf16.msra.mxu0 %v1007
        %1043 = vmatprep.subr.bf16.mxu0 0
        %1044 = vmatpush1.bf16.msra.mxu0 %v1008
        %1045 = vmatprep.subr.bf16.mxu0 0
        %1046 = vmatpush1.bf16.msra.mxu0 %v1009
        %1047 = vmatprep.subr.bf16.mxu0 0
        %1048 = vmatpush1.bf16.msra.mxu0 %v1010
        %1049 = vmatprep.subr.bf16.mxu0 0
        %1050 = vmatpush1.bf16.msra.mxu0 %v1011
        %1051 = vmatprep.subr.bf16.mxu0 0
        %1052 = vmatpush1.bf16.msra.mxu0 %v1012
        %1053 = vmatprep.subr.bf16.mxu0 0
        %1054 = vmatpush1.bf16.msra.mxu0 %v1013
        %1055 = vmatprep.subr.bf16.mxu0 0
        %1056 = vmatpush1.bf16.msra.mxu0 %v1014
        %1057 = vmatprep.subr.bf16.mxu0 0
        %1058 = vmatpush1.bf16.msra.mxu0 %v1015
        %1059 = vmatprep.subr.bf16.mxu0 0
        %1060 = vmatpush1.bf16.msra.mxu0 %v1016
        %1061 = vmatprep.subr.bf16.mxu0 0
        %1062 = vmatpush1.bf16.msra.mxu0 %v1017
        %1063 = vmatprep.subr.bf16.mxu0 0
        %1064 = vmatpush1.bf16.msra.mxu0 %v1018
        %1065 = vmatprep.subr.bf16.mxu0 0
        %1066 = vmatpush1.bf16.msra.mxu0 %v1019
        %1067 = vmatprep.subr.bf16.mxu0 0
        %1068 = vmatpush1.bf16.msra.mxu0 %v1020
        %1069 = vmatprep.mubr.bf16.mxu0 %v934
        %1070 = vmatmul.mubr.bf16.gmra.mrb[0].mxu0 %v933
        %v1071 = vpop.f32.mrb[0].mxu0
        %v1072 = vadd.f32 %v939, %v1071
        %v1073 = vpop.f32.mrb[0].mxu0
        %v1074 = vpop.f32.mrb[0].mxu0
        %v1075 = vadd.f32 %v939, %v1074
        %v1076 = vpop.f32.mrb[0].mxu0
        %1077 = vdwg.mxu0
        %v1079 = vlaneseq
        %v1080 = vshrl.u32 %v1079, 7
        %v1081 = vsub.s32 0, %v1080
        %v1082 = vrot.slane %v761, %v1081
        %v1084 = vmul.f32 %v1082, %v1072
        %v1085 = vmul.f32 %v1082, %v1075
        %v1086 = vadd.f32 %v545, %v1084
        %v1087 = vadd.f32 %v546, %v1085
        %1088 = vst [vmem:[#allocation2] sm:$0xff] %v1086
        %1089 = vst [vmem:[#allocation2 + $0x8] sm:$0xff] %v1087
        %p1090 = scmp.eq.s32.totalorder %s29, 1
        // Predicated region
        $region69: #{vocos_decoder_forward.4} parent=59 // pred_check
          %p1091 = pneg %p1090
        $region70: #{vocos_decoder_forward.4} parent=59 // pred_check_branch
          %1093 = sbr.rel (%p1091) target = $region72
        $region71: #{vocos_decoder_forward.4} parent=59 // pred_region
          %v1094 = vld [vmem:[#allocation2] sm:$0xff]
          %v1095 = vld [vmem:[#allocation2 + $0x8] sm:$0xff]
          %1096 = vst [vmem:[%s535] sm:$0xff] %v1094
          %1097 = vst [vmem:[%s535 + $0x8] sm:$0xff] %v1095
        $region72: #{vocos_decoder_forward.4} parent=59 // pred_fallthru
          _
        %p1098 = scmp.lt.s32.totalorder %s28, 1
        %s1099 = scalar_select %p1098, %s28, 1
        %s1100 = smul.addr %s1099, 2
        %s1101 = smul.addr %s1100, 8
        %s1102 = scalar_lea.vmem %s10, %s1101
        // Predicated region
        $region73: #{vocos_decoder_forward.4} parent=59 // pred_check
          %p1103 = pneg %p314
        $region74: #{vocos_decoder_forward.4} parent=59 // pred_check_branch
          %1105 = sbr.rel (%p1103) target = $region76
        $region75: #{vocos_decoder_forward.4} parent=59 // pred_region
          _
        $region76: #{vocos_decoder_forward.4} parent=59 // pred_fallthru
          _
      $region60: #{vocos_decoder_forward.4} parent=5 // pred_fallthru
        _
      %p1106 = scmp.le.s32.totalorder 2, %s19
      // Predicated region
      $region77: #{vocos_decoder_forward.4} parent=5 // pred_check
        %p1107 = pneg %p1106
      $region78: #{vocos_decoder_forward.4} parent=5 // pred_check_branch
        %1109 = sbr.rel (%p1107) target = $region80
      $region79: #{vocos_decoder_forward.4} parent=5 // pred_region
        %s1110 = ssub.s32 %s19, 2
        // Predicated region
        $region81: #{vocos_decoder_forward.4} parent=79 // pred_check
          %p1111 = pneg %p320
        $region82: #{vocos_decoder_forward.4} parent=79 // pred_check_branch
          %1113 = sbr.rel (%p1111) target = $region84
        $region83: #{vocos_decoder_forward.4} parent=79 // pred_region
          %p1114 = scmp.lt.s32.totalorder %s30, 1
          %s1115 = scalar_select %p1114, %s30, 1
          %s1116 = smul.addr %s1115, 2
          %s1117 = smul.addr %s1116, 8
          %s1118 = scalar_lea.vmem %s10, %s1117
        $region84: #{vocos_decoder_forward.4} parent=79 // pred_fallthru
          _
      $region80: #{vocos_decoder_forward.4} parent=5 // pred_fallthru
        _
    $region6: #{vocos_decoder_forward.4} parent=1 // loop_footer
      %s23 = sadd.s32 1, %s19
    $region7: #{vocos_decoder_forward.4} parent=1 // loop_footer_branch
      %18 = sbr.rel target = $region3
    $region8: #{vocos_decoder_forward.4} parent=1 // loop_exit
      _
    %1119 = vsyncpa [#allocation4], 1
    %s1120 = scalar_lea.sflag [#allocation4], 1
    %1121 = vsyncpa %s1120, 1

</llo_original>
